<compile_context>
chip_gen: v7x
topology: tpu7x:2x2x1
jax: 0.10.0
libtpu: 0.0.40
codegen_flags: <defaults>
</compile_context>

<pallas_src>
import functools

import jax
import jax.numpy as jnp
from jax.experimental import pallas as pl
from jax.experimental.pallas import tpu as pltpu


def _block_kernel(x_ref,
                  wc02_ref, wqkv_ref, wpT_ref, w1T_ref, w2T_ref,
                  vecs_ref, b1_ref,
                  o_ref,
                  o_scr_ref,
                  *, num_heads, eps):
    f32 = jnp.float32
    bf16 = jnp.bfloat16

    bt, N, C = x_ref.shape            # (batch_tile, tokens, channels)
    R = bt * N                        # rows processed this grid step
    dh = C // num_heads
    scale = dh ** -0.5

    x = x_ref[...].astype(f32).reshape(R, C)

    vecs = vecs_ref[...]              # (8, C) packed small params (f32)
    bc, bp = vecs[0:1], vecs[1:2]
    g1, be1 = vecs[2:3], vecs[3:4]
    g2, be2 = vecs[4:5], vecs[5:6]
    b2 = vecs[6:7]
    b1 = b1_ref[...]                  # (1, hidden)

    def layernorm(z, g, b):
        mu = jnp.mean(z, axis=-1, keepdims=True)
        var = jnp.mean((z - mu) ** 2, axis=-1, keepdims=True)
        return (z - mu) * jax.lax.rsqrt(var + eps) * g + b

    def mm(a_bf16, w_bf16):           # bf16 MXU matmul, f32 accumulation
        return jnp.dot(a_bf16, w_bf16, preferred_element_type=f32)

    # ------------------- attention branch -------------------
    xn = layernorm(x, g1, be1)
    xn_bf = xn.astype(bf16)           # cast once, reused below

    # Fused conv-middle / K / V projection: one (R, C) x (C, 3C) matmul.
    qkv = mm(xn_bf, wqkv_ref[...])    # (R, 3C)
    q_mid = qkv[:, :C]
    k = qkv[:, C:2 * C]
    v = qkv[:, 2 * C:]

    # Conv1d(k=3, pad=1) shifted taps: XLU roll + (R, 1) boundary mask,
    # then a single K=2C matmul on [x_prev | x_next].
    tok = jax.lax.broadcasted_iota(jnp.int32, (bt, N, 1), 1).reshape(R, 1)
    x_prev = jnp.where(tok == 0, 0.0, pltpu.roll(xn, 1, axis=0))
    x_next = jnp.where(tok == N - 1, 0.0, pltpu.roll(xn, R - 1, axis=0))
    x_shift_bf = jnp.concatenate([x_prev, x_next], axis=-1).astype(bf16)
    q = mm(x_shift_bf, wc02_ref[...]) + q_mid + bc        # (R, C)

    # Multi-head softmax attention: batched over the batch tile per head;
    # each head writes its slab into VMEM scratch (no concat tree).
    q3 = q.reshape(bt, N, C)
    k3 = k.reshape(bt, N, C)
    v3 = v.reshape(bt, N, C)
    for h in range(num_heads):
        cs = h * dh
        qh = q3[:, :, cs:cs + dh].astype(bf16)
        kh = k3[:, :, cs:cs + dh].astype(bf16)
        vh = v3[:, :, cs:cs + dh].astype(bf16)
        s = jnp.einsum('bnd,bmd->bnm', qh, kh,
                       preferred_element_type=f32) * scale
        s = s - jnp.max(s, axis=-1, keepdims=True)
        e = jnp.exp(s)                                     # f32 on EUP
        oh = jnp.einsum('bnm,bmd->bnd', e.astype(bf16), vh,
                        preferred_element_type=f32)
        # Fold softmax normalization into the (bt, N, dh) head output.
        oh = oh * pl.reciprocal(jnp.sum(e, axis=-1, keepdims=True),
                                approx=True)
        o_scr_ref[:, cs:cs + dh] = oh.reshape(R, dh)

    o_all = o_scr_ref[...]                                 # (R, C)

    # Single K=C projection of (q - attn_out).
    proj = mm((q - o_all).astype(bf16), wpT_ref[...]) + bp
    x1 = x + proj                                          # residual 1

    # ------------------- MLP branch -------------------
    xn2 = layernorm(x1, g2, be2)
    h1 = mm(xn2.astype(bf16), w1T_ref[...]) + b1
    h1 = 0.5 * h1 * (1.0 + jax.lax.erf(h1 * (2.0 ** -0.5)))   # exact GELU
    h2 = mm(h1.astype(bf16), w2T_ref[...]) + b2

    o_ref[...] = (x1 + h2).reshape(bt, N, C).astype(o_ref.dtype)


def block_forward(x, params, *, num_heads, eps=1e-5, batch_tile=None):
    B, N, C = x.shape
    H = params["W1"].shape[0]
    assert C % num_heads == 0

    # --- batch-tile heuristic: target ~512 MXU rows/step, keep grid >= 2 ---
    bt = batch_tile
    if bt is None:
        bt = max(1, min(B, 512 // max(N, 1)))
        if B >= 2:
            bt = max(1, min(bt, B // 2))     # grid >= 2 -> both v7x TCs busy
        while B % bt:
            bt -= 1
    assert B % bt == 0, "batch_tile must divide batch"

    f32, bf16 = jnp.float32, jnp.bfloat16
    Wc = jnp.asarray(params["Wc"], f32)

    # Pack every (C,)-sized parameter into one lane-dense (8, C) array.
    vecs = jnp.zeros((8, C), f32)
    for i, name in enumerate(["bc", "bp", "g1", "be1", "g2", "be2", "b2"]):
        vecs = vecs.at[i].set(jnp.asarray(params[name], f32))

    # Fused weights (built once in the wrapper, resident bf16 in VMEM).
    w_c02 = jnp.concatenate([Wc[:, :, 0].T, Wc[:, :, 2].T], axis=0)      # (2C, C)
    w_qkv = jnp.concatenate([Wc[:, :, 1].T,
                             jnp.asarray(params["Wk"], f32).T,
                             jnp.asarray(params["Wv"], f32).T], axis=1)  # (C, 3C)
    weights = [
        w_c02, w_qkv,
        jnp.asarray(params["Wp"], f32).T,        # (C, C)
        jnp.asarray(params["W1"], f32).T,        # (C, H)
        jnp.asarray(params["W2"], f32).T,        # (H, C)
    ]
    weights = [w.astype(bf16) for w in weights]
    b1 = jnp.asarray(params["b1"], f32).reshape(1, H)

    kern_inputs = weights + [vecs, b1]

    in_specs = [pl.BlockSpec((bt, N, C), lambda b: (b, 0, 0))]
    # Constant block index -> weights are not re-fetched across grid steps.
    in_specs += [pl.BlockSpec(p.shape, lambda b: (0, 0)) for p in kern_inputs]

    # --- generation-aware VMEM budget (v7x has only 64 MiB per core) ---
    try:
        vmem_cap = int(pltpu.get_tpu_info().vmem_capacity_bytes)
    except Exception:
        vmem_cap = 64 << 20                     # conservative default
    weight_bytes = sum(int(p.size) * p.dtype.itemsize for p in kern_inputs)
    blk_in = bt * N * C * 2                     # bf16 activation block
    blk_out = bt * N * C * 4                    # f32 output block
    scratch_bytes = bt * N * C * 4              # attention-output scratch
    work = bt * N * (24 * C + 6 * max(H, C) + 8 * N) * 4
    need = (2 * weight_bytes + 2 * (blk_in + blk_out)
            + scratch_bytes + work + (8 << 20))
    vmem_limit = int(min(max(need, 16 << 20), (vmem_cap * 3) // 4))

    return pl.pallas_call(
        functools.partial(_block_kernel, num_heads=num_heads, eps=eps),
        out_shape=jax.ShapeDtypeStruct((B, N, C), jnp.float32),
        grid_spec=pltpu.PrefetchScalarGridSpec(
            num_scalar_prefetch=0,
            grid=(B // bt,),
            in_specs=in_specs,
            out_specs=pl.BlockSpec((bt, N, C), lambda b: (b, 0, 0)),
            scratch_shapes=[pltpu.VMEM((bt * N, C), jnp.float32)],
        ),
        compiler_params=pltpu.CompilerParams(
            dimension_semantics=("parallel",),
            vmem_limit_bytes=vmem_limit,
        ),
    )(x.astype(bf16), *kern_inputs)


# ----------------------- pure-JAX reference (f32) -----------------------
def ref_block(x, p, *, num_heads, eps=1e-5):
    B, N, C = x.shape
    dh = C // num_heads

    def ln(z, g, b):
        mu = z.mean(-1, keepdims=True)
        var = ((z - mu) ** 2).mean(-1, keepdims=True)
        return (z - mu) / jnp.sqrt(var + eps) * g + b

    xn = ln(x, p["g1"], p["be1"])
    xp = jnp.pad(xn, ((0, 0), (1, 1), (0, 0)))
    q = (xp[:, :-2] @ p["Wc"][:, :, 0].T
         + xp[:, 1:-1] @ p["Wc"][:, :, 1].T
         + xp[:, 2:] @ p["Wc"][:, :, 2].T + p["bc"])
    k = xn @ p["Wk"].T
    v = xn @ p["Wv"].T
    qh = q.reshape(B, N, num_heads, dh).transpose(0, 2, 1, 3)
    kh = k.reshape(B, N, num_heads, dh).transpose(0, 2, 1, 3)
    vh = v.reshape(B, N, num_heads, dh).transpose(0, 2, 1, 3)
    a = jnp.einsum("bhnd,bhmd->bhnm", qh, kh) * dh ** -0.5
    a = jax.nn.softmax(a, axis=-1)
    o = jnp.einsum("bhnm,bhmd->bhnd", a, vh).transpose(0, 2, 1, 3).reshape(B, N, C)
    x1 = x + ((q - o) @ p["Wp"].T + p["bp"])
    xn2 = ln(x1, p["g2"], p["be2"])
    h = jax.nn.gelu(xn2 @ p["W1"].T + p["b1"], approximate=False)
    return x1 + (h @ p["W2"].T + p["b2"])


def init_params(key, dim, mlp_hidden):
    ks = jax.random.split(key, 12)
    n = lambda k, shape, s=0.05: s * jax.random.normal(k, shape, jnp.float32)
    return {
        "Wc": n(ks[0], (dim, dim, 3)),
        "bc": n(ks[1], (dim,)),
        "Wk": n(ks[2], (dim, dim)),
        "Wv": n(ks[3], (dim, dim)),
        "Wp": n(ks[4], (dim, dim)),
        "bp": n(ks[5], (dim,)),
        "g1": 1.0 + n(ks[6], (dim,), 0.1),
        "be1": n(ks[7], (dim,), 0.1),
        "g2": 1.0 + n(ks[8], (dim,), 0.1),
        "be2": n(ks[9], (dim,), 0.1),
        "W1": n(ks[10], (mlp_hidden, dim)),
        "b1": n(ks[11], (mlp_hidden,)),
        "W2": n(jax.random.fold_in(key, 100), (dim, mlp_hidden)),
        "b2": n(jax.random.fold_in(key, 101), (dim,)),
    }


if __name__ == "__main__":
    B, N, C = 2, 8, 32
    num_heads, mlp_hidden = 4, 64

    key = jax.random.PRNGKey(0)
    kx, kp = jax.random.split(key)
    x = jax.random.normal(kx, (B, N, C), jnp.float32)
    params = init_params(kp, C, mlp_hidden)

    out = block_forward(x, params, num_heads=num_heads)
    out = jax.block_until_ready(out)

    ref = ref_block(x, params, num_heads=num_heads)
    err = float(jnp.max(jnp.abs(out - ref)))
    assert out.shape == (B, N, C)
    # bf16 HBM input + bf16 MXU operands (f32 accumulation) vs. pure-f32 ref.
    assert err < 4e-2, f"max abs diff too large: {err}"
    print("KERNEL_OK")
</pallas_src>

<mosaic_0001>
module attributes {stable_mosaic.version = 11 : i64} {
  func.func @_block_kernel(%arg0: i32, %arg1: memref<1x8x32xbf16, #tpu.memory_space<vmem>>, %arg2: memref<64x32xbf16, #tpu.memory_space<vmem>>, %arg3: memref<32x96xbf16, #tpu.memory_space<vmem>>, %arg4: memref<32x32xbf16, #tpu.memory_space<vmem>>, %arg5: memref<32x64xbf16, #tpu.memory_space<vmem>>, %arg6: memref<64x32xbf16, #tpu.memory_space<vmem>>, %arg7: memref<8x32xf32, #tpu.memory_space<vmem>>, %arg8: memref<1x64xf32, #tpu.memory_space<vmem>>, %arg9: memref<1x8x32xf32, #tpu.memory_space<vmem>>, %arg10: memref<8x32xf32, #tpu.memory_space<vmem>>) attributes {dimension_semantics = [#tpu.dimension_semantics<parallel>], iteration_bounds = array<i64: 2>, scalar_prefetch = 0 : i64, scratch_operands = 1 : i64, tpu.core_type = #tpu.core_type<tc>, window_params = [{transform_indices = @transform_0, window_bounds = array<i64: 1, 8, 32>}, {pipeline_mode = #tpu.pipeline_mode<synchronous>, transform_indices = @transform_1, window_bounds = array<i64: 64, 32>}, {pipeline_mode = #tpu.pipeline_mode<synchronous>, transform_indices = @transform_2, window_bounds = array<i64: 32, 96>}, {pipeline_mode = #tpu.pipeline_mode<synchronous>, transform_indices = @transform_3, window_bounds = array<i64: 32, 32>}, {pipeline_mode = #tpu.pipeline_mode<synchronous>, transform_indices = @transform_4, window_bounds = array<i64: 32, 64>}, {pipeline_mode = #tpu.pipeline_mode<synchronous>, transform_indices = @transform_5, window_bounds = array<i64: 64, 32>}, {pipeline_mode = #tpu.pipeline_mode<synchronous>, transform_indices = @transform_6, window_bounds = array<i64: 8, 32>}, {pipeline_mode = #tpu.pipeline_mode<synchronous>, transform_indices = @transform_7, window_bounds = array<i64: 1, 64>}, {transform_indices = @transform_8, window_bounds = array<i64: 1, 8, 32>}]} {
    %c0 = arith.constant 0 : index
    %c0_0 = arith.constant 0 : index
    %c0_1 = arith.constant 0 : index
    %0 = vector.load %arg1[%c0, %c0_0, %c0_1] : memref<1x8x32xbf16, #tpu.memory_space<vmem>>, vector<1x8x32xbf16>
    %1 = arith.extf %0 : vector<1x8x32xbf16> to vector<1x8x32xf32>
    %2 = vector.shape_cast %1 : vector<1x8x32xf32> to vector<8x32xf32>
    %c0_2 = arith.constant 0 : index
    %c0_3 = arith.constant 0 : index
    %3 = vector.load %arg7[%c0_2, %c0_3] : memref<8x32xf32, #tpu.memory_space<vmem>>, vector<8x32xf32>
    %4 = vector.extract_strided_slice %3 {offsets = [0, 0], sizes = [1, 32], strides = [1, 1]} : vector<8x32xf32> to vector<1x32xf32>
    %5 = vector.extract_strided_slice %3 {offsets = [1, 0], sizes = [1, 32], strides = [1, 1]} : vector<8x32xf32> to vector<1x32xf32>
    %6 = vector.extract_strided_slice %3 {offsets = [2, 0], sizes = [1, 32], strides = [1, 1]} : vector<8x32xf32> to vector<1x32xf32>
    %7 = vector.extract_strided_slice %3 {offsets = [3, 0], sizes = [1, 32], strides = [1, 1]} : vector<8x32xf32> to vector<1x32xf32>
    %8 = vector.extract_strided_slice %3 {offsets = [4, 0], sizes = [1, 32], strides = [1, 1]} : vector<8x32xf32> to vector<1x32xf32>
    %9 = vector.extract_strided_slice %3 {offsets = [5, 0], sizes = [1, 32], strides = [1, 1]} : vector<8x32xf32> to vector<1x32xf32>
    %10 = vector.extract_strided_slice %3 {offsets = [6, 0], sizes = [1, 32], strides = [1, 1]} : vector<8x32xf32> to vector<1x32xf32>
    %c0_4 = arith.constant 0 : index
    %c0_5 = arith.constant 0 : index
    %11 = vector.load %arg8[%c0_4, %c0_5] : memref<1x64xf32, #tpu.memory_space<vmem>>, vector<1x64xf32>
    %cst = arith.constant dense<0.000000e+00> : vector<8xf32>
    %12 = vector.multi_reduction <add>, %2, %cst [1] : vector<8x32xf32> to vector<8xf32>
    %13 = vector.shape_cast %12 : vector<8xf32> to vector<8x1xf32>
    %cst_6 = arith.constant 3.200000e+01 : f32
    %14 = vector.broadcast %cst_6 : f32 to vector<8x1xf32>
    %15 = arith.divf %13, %14 : vector<8x1xf32>
    %16 = vector.broadcast %15 : vector<8x1xf32> to vector<8x32xf32>
    %17 = arith.subf %2, %16 : vector<8x32xf32>
    %18 = arith.mulf %17, %17 : vector<8x32xf32>
    %cst_7 = arith.constant dense<0.000000e+00> : vector<8xf32>
    %19 = vector.multi_reduction <add>, %18, %cst_7 [1] : vector<8x32xf32> to vector<8xf32>
    %20 = vector.shape_cast %19 : vector<8xf32> to vector<8x1xf32>
    %cst_8 = arith.constant 3.200000e+01 : f32
    %21 = vector.broadcast %cst_8 : f32 to vector<8x1xf32>
    %22 = arith.divf %20, %21 : vector<8x1xf32>
    %23 = vector.broadcast %15 : vector<8x1xf32> to vector<8x32xf32>
    %24 = arith.subf %2, %23 : vector<8x32xf32>
    %cst_9 = arith.constant 9.99999974E-6 : f32
    %25 = vector.broadcast %cst_9 : f32 to vector<8x1xf32>
    %26 = arith.addf %22, %25 : vector<8x1xf32>
    %27 = math.rsqrt %26 : vector<8x1xf32>
    %28 = vector.broadcast %27 : vector<8x1xf32> to vector<8x32xf32>
    %29 = arith.mulf %24, %28 : vector<8x32xf32>
    %30 = vector.broadcast %6 : vector<1x32xf32> to vector<8x32xf32>
    %31 = arith.mulf %29, %30 : vector<8x32xf32>
    %32 = vector.broadcast %7 : vector<1x32xf32> to vector<8x32xf32>
    %33 = arith.addf %31, %32 : vector<8x32xf32>
    %34 = arith.truncf %33 : vector<8x32xf32> to vector<8x32xbf16>
    %c0_10 = arith.constant 0 : index
    %c0_11 = arith.constant 0 : index
    %35 = vector.load %arg3[%c0_10, %c0_11] : memref<32x96xbf16, #tpu.memory_space<vmem>>, vector<32x96xbf16>
    %cst_12 = arith.constant dense<0.000000e+00> : vector<8x96xf32>
    %36 = tpu.matmul %34, %35, %cst_12 {dimension_numbers = #tpu.dot_dimension_numbers<[1], [0], [0], [1], [0, 0, 1, 1], [], []>} : vector<8x32xbf16>, vector<32x96xbf16>, vector<8x96xf32> -> vector<8x96xf32>
    %37 = vector.extract_strided_slice %36 {offsets = [0, 0], sizes = [8, 32], strides = [1, 1]} : vector<8x96xf32> to vector<8x32xf32>
    %38 = vector.extract_strided_slice %36 {offsets = [0, 32], sizes = [8, 32], strides = [1, 1]} : vector<8x96xf32> to vector<8x32xf32>
    %39 = vector.extract_strided_slice %36 {offsets = [0, 64], sizes = [8, 32], strides = [1, 1]} : vector<8x96xf32> to vector<8x32xf32>
    %40 = tpu.iota {dimensions = array<i32: 1>} : vector<1x8x1xi32>
    %41 = vector.shape_cast %40 : vector<1x8x1xi32> to vector<8x1xi32>
    %c0_i32 = arith.constant 0 : i32
    %42 = vector.broadcast %c0_i32 : i32 to vector<8x1xi32>
    %43 = arith.cmpi eq, %41, %42 : vector<8x1xi32>
    %c1_i32 = arith.constant 1 : i32
    %44 = tpu.dynamic_rotate %33 by %c1_i32 dim 0 : vector<8x32xf32>, i32 -> vector<8x32xf32>
    %cst_13 = arith.constant 0.000000e+00 : f32
    %45 = vector.shape_cast %43 : vector<8x1xi1> to vector<8x1xi1>
    %46 = vector.broadcast %45 : vector<8x1xi1> to vector<8x32xi1>
    %47 = vector.broadcast %cst_13 : f32 to vector<8x32xf32>
    %48 = arith.select %46, %47, %44 : vector<8x32xi1>, vector<8x32xf32>
    %c7_i32 = arith.constant 7 : i32
    %49 = vector.broadcast %c7_i32 : i32 to vector<8x1xi32>
    %50 = arith.cmpi eq, %41, %49 : vector<8x1xi32>
    %c7_i32_14 = arith.constant 7 : i32
    %51 = tpu.dynamic_rotate %33 by %c7_i32_14 dim 0 : vector<8x32xf32>, i32 -> vector<8x32xf32>
    %cst_15 = arith.constant 0.000000e+00 : f32
    %52 = vector.shape_cast %50 : vector<8x1xi1> to vector<8x1xi1>
    %53 = vector.broadcast %52 : vector<8x1xi1> to vector<8x32xi1>
    %54 = vector.broadcast %cst_15 : f32 to vector<8x32xf32>
    %55 = arith.select %53, %54, %51 : vector<8x32xi1>, vector<8x32xf32>
    %56 = tpu.concatenate %48, %55 in 1 : vector<8x32xf32>, vector<8x32xf32> -> vector<8x64xf32>
    %57 = arith.truncf %56 : vector<8x64xf32> to vector<8x64xbf16>
    %c0_16 = arith.constant 0 : index
    %c0_17 = arith.constant 0 : index
    %58 = vector.load %arg2[%c0_16, %c0_17] : memref<64x32xbf16, #tpu.memory_space<vmem>>, vector<64x32xbf16>
    %cst_18 = arith.constant dense<0.000000e+00> : vector<8x32xf32>
    %59 = tpu.matmul %57, %58, %cst_18 {dimension_numbers = #tpu.dot_dimension_numbers<[1], [0], [0], [1], [0, 0, 1, 1], [], []>} : vector<8x64xbf16>, vector<64x32xbf16>, vector<8x32xf32> -> vector<8x32xf32>
    %60 = arith.addf %59, %37 : vector<8x32xf32>
    %61 = vector.broadcast %4 : vector<1x32xf32> to vector<8x32xf32>
    %62 = arith.addf %60, %61 : vector<8x32xf32>
    %63 = vector.shape_cast %62 : vector<8x32xf32> to vector<1x8x32xf32>
    %64 = vector.shape_cast %38 : vector<8x32xf32> to vector<1x8x32xf32>
    %65 = vector.shape_cast %39 : vector<8x32xf32> to vector<1x8x32xf32>
    %66 = vector.extract_strided_slice %63 {offsets = [0, 0, 0], sizes = [1, 8, 8], strides = [1, 1, 1]} : vector<1x8x32xf32> to vector<1x8x8xf32>
    %67 = arith.truncf %66 : vector<1x8x8xf32> to vector<1x8x8xbf16>
    %68 = vector.extract_strided_slice %64 {offsets = [0, 0, 0], sizes = [1, 8, 8], strides = [1, 1, 1]} : vector<1x8x32xf32> to vector<1x8x8xf32>
    %69 = arith.truncf %68 : vector<1x8x8xf32> to vector<1x8x8xbf16>
    %70 = vector.extract_strided_slice %65 {offsets = [0, 0, 0], sizes = [1, 8, 8], strides = [1, 1, 1]} : vector<1x8x32xf32> to vector<1x8x8xf32>
    %71 = arith.truncf %70 : vector<1x8x8xf32> to vector<1x8x8xbf16>
    "tpu.trace_start"() <{level = 10 : i32, message = "bnd,bmd->bnm"}> : () -> ()
    %cst_19 = arith.constant dense<0.000000e+00> : vector<1x8x8xf32>
    %72 = tpu.matmul %67, %69, %cst_19 {dimension_numbers = #tpu.dot_dimension_numbers<[2], [2], [1], [1], [0, 0, 0, 1, 1, 1], [0], [0]>} : vector<1x8x8xbf16>, vector<1x8x8xbf16>, vector<1x8x8xf32> -> vector<1x8x8xf32>
    "tpu.trace_stop"() : () -> ()
    %cst_20 = arith.constant 0.353553385 : f32
    %73 = vector.broadcast %cst_20 : f32 to vector<1x8x8xf32>
    %74 = arith.mulf %72, %73 : vector<1x8x8xf32>
    %cst_21 = arith.constant dense<0xFF800000> : vector<1x8xf32>
    %75 = vector.multi_reduction <maximumf>, %74, %cst_21 [2] : vector<1x8x8xf32> to vector<1x8xf32>
    %76 = vector.shape_cast %75 : vector<1x8xf32> to vector<1x8x1xf32>
    %77 = vector.broadcast %76 : vector<1x8x1xf32> to vector<1x8x8xf32>
    %78 = arith.subf %74, %77 : vector<1x8x8xf32>
    %79 = math.exp %78 : vector<1x8x8xf32>
    %80 = arith.truncf %79 : vector<1x8x8xf32> to vector<1x8x8xbf16>
    "tpu.trace_start"() <{level = 10 : i32, message = "bnm,bmd->bnd"}> : () -> ()
    %cst_22 = arith.constant dense<0.000000e+00> : vector<1x8x8xf32>
    %81 = tpu.matmul %80, %71, %cst_22 {dimension_numbers = #tpu.dot_dimension_numbers<[2], [1], [1], [2], [0, 0, 0, 1, 1, 2], [0], [0]>} : vector<1x8x8xbf16>, vector<1x8x8xbf16>, vector<1x8x8xf32> -> vector<1x8x8xf32>
    "tpu.trace_stop"() : () -> ()
    %cst_23 = arith.constant dense<0.000000e+00> : vector<1x8xf32>
    %82 = vector.multi_reduction <add>, %79, %cst_23 [2] : vector<1x8x8xf32> to vector<1x8xf32>
    %83 = vector.shape_cast %82 : vector<1x8xf32> to vector<1x8x1xf32>
    %84 = tpu.reciprocal %83 {approx = true} : vector<1x8x1xf32> -> vector<1x8x1xf32>
    %85 = vector.broadcast %84 : vector<1x8x1xf32> to vector<1x8x8xf32>
    %86 = arith.mulf %81, %85 : vector<1x8x8xf32>
    %87 = vector.shape_cast %86 : vector<1x8x8xf32> to vector<8x8xf32>
    %c0_24 = arith.constant 0 : index
    %c0_25 = arith.constant 0 : index
    %88 = vector.load %arg10[%c0_24, %c0_25] : memref<8x32xf32, #tpu.memory_space<vmem>>, vector<8x8xf32>
    tpu.vector_store %arg10[%c0_24, %c0_25], %87 {strides = array<i32>} : memref<8x32xf32, #tpu.memory_space<vmem>>, vector<8x8xf32>,
    %89 = vector.extract_strided_slice %63 {offsets = [0, 0, 8], sizes = [1, 8, 8], strides = [1, 1, 1]} : vector<1x8x32xf32> to vector<1x8x8xf32>
    %90 = arith.truncf %89 : vector<1x8x8xf32> to vector<1x8x8xbf16>
    %91 = vector.extract_strided_slice %64 {offsets = [0, 0, 8], sizes = [1, 8, 8], strides = [1, 1, 1]} : vector<1x8x32xf32> to vector<1x8x8xf32>
    %92 = arith.truncf %91 : vector<1x8x8xf32> to vector<1x8x8xbf16>
    %93 = vector.extract_strided_slice %65 {offsets = [0, 0, 8], sizes = [1, 8, 8], strides = [1, 1, 1]} : vector<1x8x32xf32> to vector<1x8x8xf32>
    %94 = arith.truncf %93 : vector<1x8x8xf32> to vector<1x8x8xbf16>
    "tpu.trace_start"() <{level = 10 : i32, message = "bnd,bmd->bnm"}> : () -> ()
    %cst_26 = arith.constant dense<0.000000e+00> : vector<1x8x8xf32>
    %95 = tpu.matmul %90, %92, %cst_26 {dimension_numbers = #tpu.dot_dimension_numbers<[2], [2], [1], [1], [0, 0, 0, 1, 1, 1], [0], [0]>} : vector<1x8x8xbf16>, vector<1x8x8xbf16>, vector<1x8x8xf32> -> vector<1x8x8xf32>
    "tpu.trace_stop"() : () -> ()
    %cst_27 = arith.constant 0.353553385 : f32
    %96 = vector.broadcast %cst_27 : f32 to vector<1x8x8xf32>
    %97 = arith.mulf %95, %96 : vector<1x8x8xf32>
    %cst_28 = arith.constant dense<0xFF800000> : vector<1x8xf32>
    %98 = vector.multi_reduction <maximumf>, %97, %cst_28 [2] : vector<1x8x8xf32> to vector<1x8xf32>
    %99 = vector.shape_cast %98 : vector<1x8xf32> to vector<1x8x1xf32>
    %100 = vector.broadcast %99 : vector<1x8x1xf32> to vector<1x8x8xf32>
    %101 = arith.subf %97, %100 : vector<1x8x8xf32>
    %102 = math.exp %101 : vector<1x8x8xf32>
    %103 = arith.truncf %102 : vector<1x8x8xf32> to vector<1x8x8xbf16>
    "tpu.trace_start"() <{level = 10 : i32, message = "bnm,bmd->bnd"}> : () -> ()
    %cst_29 = arith.constant dense<0.000000e+00> : vector<1x8x8xf32>
    %104 = tpu.matmul %103, %94, %cst_29 {dimension_numbers = #tpu.dot_dimension_numbers<[2], [1], [1], [2], [0, 0, 0, 1, 1, 2], [0], [0]>} : vector<1x8x8xbf16>, vector<1x8x8xbf16>, vector<1x8x8xf32> -> vector<1x8x8xf32>
    "tpu.trace_stop"() : () -> ()
    %cst_30 = arith.constant dense<0.000000e+00> : vector<1x8xf32>
    %105 = vector.multi_reduction <add>, %102, %cst_30 [2] : vector<1x8x8xf32> to vector<1x8xf32>
    %106 = vector.shape_cast %105 : vector<1x8xf32> to vector<1x8x1xf32>
    %107 = tpu.reciprocal %106 {approx = true} : vector<1x8x1xf32> -> vector<1x8x1xf32>
    %108 = vector.broadcast %107 : vector<1x8x1xf32> to vector<1x8x8xf32>
    %109 = arith.mulf %104, %108 : vector<1x8x8xf32>
    %110 = vector.shape_cast %109 : vector<1x8x8xf32> to vector<8x8xf32>
    %c0_31 = arith.constant 0 : index
    %c8 = arith.constant 8 : index
    %111 = vector.load %arg10[%c0_31, %c8] : memref<8x32xf32, #tpu.memory_space<vmem>>, vector<8x8xf32>
    tpu.vector_store %arg10[%c0_31, %c8], %110 {strides = array<i32>} : memref<8x32xf32, #tpu.memory_space<vmem>>, vector<8x8xf32>,
    %112 = vector.extract_strided_slice %63 {offsets = [0, 0, 16], sizes = [1, 8, 8], strides = [1, 1, 1]} : vector<1x8x32xf32> to vector<1x8x8xf32>
    %113 = arith.truncf %112 : vector<1x8x8xf32> to vector<1x8x8xbf16>
    %114 = vector.extract_strided_slice %64 {offsets = [0, 0, 16], sizes = [1, 8, 8], strides = [1, 1, 1]} : vector<1x8x32xf32> to vector<1x8x8xf32>
    %115 = arith.truncf %114 : vector<1x8x8xf32> to vector<1x8x8xbf16>
    %116 = vector.extract_strided_slice %65 {offsets = [0, 0, 16], sizes = [1, 8, 8], strides = [1, 1, 1]} : vector<1x8x32xf32> to vector<1x8x8xf32>
    %117 = arith.truncf %116 : vector<1x8x8xf32> to vector<1x8x8xbf16>
    "tpu.trace_start"() <{level = 10 : i32, message = "bnd,bmd->bnm"}> : () -> ()
    %cst_32 = arith.constant dense<0.000000e+00> : vector<1x8x8xf32>
    %118 = tpu.matmul %113, %115, %cst_32 {dimension_numbers = #tpu.dot_dimension_numbers<[2], [2], [1], [1], [0, 0, 0, 1, 1, 1], [0], [0]>} : vector<1x8x8xbf16>, vector<1x8x8xbf16>, vector<1x8x8xf32> -> vector<1x8x8xf32>
    "tpu.trace_stop"() : () -> ()
    %cst_33 = arith.constant 0.353553385 : f32
    %119 = vector.broadcast %cst_33 : f32 to vector<1x8x8xf32>
    %120 = arith.mulf %118, %119 : vector<1x8x8xf32>
    %cst_34 = arith.constant dense<0xFF800000> : vector<1x8xf32>
    %121 = vector.multi_reduction <maximumf>, %120, %cst_34 [2] : vector<1x8x8xf32> to vector<1x8xf32>
    %122 = vector.shape_cast %121 : vector<1x8xf32> to vector<1x8x1xf32>
    %123 = vector.broadcast %122 : vector<1x8x1xf32> to vector<1x8x8xf32>
    %124 = arith.subf %120, %123 : vector<1x8x8xf32>
    %125 = math.exp %124 : vector<1x8x8xf32>
    %126 = arith.truncf %125 : vector<1x8x8xf32> to vector<1x8x8xbf16>
    "tpu.trace_start"() <{level = 10 : i32, message = "bnm,bmd->bnd"}> : () -> ()
    %cst_35 = arith.constant dense<0.000000e+00> : vector<1x8x8xf32>
    %127 = tpu.matmul %126, %117, %cst_35 {dimension_numbers = #tpu.dot_dimension_numbers<[2], [1], [1], [2], [0, 0, 0, 1, 1, 2], [0], [0]>} : vector<1x8x8xbf16>, vector<1x8x8xbf16>, vector<1x8x8xf32> -> vector<1x8x8xf32>
    "tpu.trace_stop"() : () -> ()
    %cst_36 = arith.constant dense<0.000000e+00> : vector<1x8xf32>
    %128 = vector.multi_reduction <add>, %125, %cst_36 [2] : vector<1x8x8xf32> to vector<1x8xf32>
    %129 = vector.shape_cast %128 : vector<1x8xf32> to vector<1x8x1xf32>
    %130 = tpu.reciprocal %129 {approx = true} : vector<1x8x1xf32> -> vector<1x8x1xf32>
    %131 = vector.broadcast %130 : vector<1x8x1xf32> to vector<1x8x8xf32>
    %132 = arith.mulf %127, %131 : vector<1x8x8xf32>
    %133 = vector.shape_cast %132 : vector<1x8x8xf32> to vector<8x8xf32>
    %c0_37 = arith.constant 0 : index
    %c16 = arith.constant 16 : index
    %134 = vector.load %arg10[%c0_37, %c16] : memref<8x32xf32, #tpu.memory_space<vmem>>, vector<8x8xf32>
    tpu.vector_store %arg10[%c0_37, %c16], %133 {strides = array<i32>} : memref<8x32xf32, #tpu.memory_space<vmem>>, vector<8x8xf32>,
    %135 = vector.extract_strided_slice %63 {offsets = [0, 0, 24], sizes = [1, 8, 8], strides = [1, 1, 1]} : vector<1x8x32xf32> to vector<1x8x8xf32>
    %136 = arith.truncf %135 : vector<1x8x8xf32> to vector<1x8x8xbf16>
    %137 = vector.extract_strided_slice %64 {offsets = [0, 0, 24], sizes = [1, 8, 8], strides = [1, 1, 1]} : vector<1x8x32xf32> to vector<1x8x8xf32>
    %138 = arith.truncf %137 : vector<1x8x8xf32> to vector<1x8x8xbf16>
    %139 = vector.extract_strided_slice %65 {offsets = [0, 0, 24], sizes = [1, 8, 8], strides = [1, 1, 1]} : vector<1x8x32xf32> to vector<1x8x8xf32>
    %140 = arith.truncf %139 : vector<1x8x8xf32> to vector<1x8x8xbf16>
    "tpu.trace_start"() <{level = 10 : i32, message = "bnd,bmd->bnm"}> : () -> ()
    %cst_38 = arith.constant dense<0.000000e+00> : vector<1x8x8xf32>
    %141 = tpu.matmul %136, %138, %cst_38 {dimension_numbers = #tpu.dot_dimension_numbers<[2], [2], [1], [1], [0, 0, 0, 1, 1, 1], [0], [0]>} : vector<1x8x8xbf16>, vector<1x8x8xbf16>, vector<1x8x8xf32> -> vector<1x8x8xf32>
    "tpu.trace_stop"() : () -> ()
    %cst_39 = arith.constant 0.353553385 : f32
    %142 = vector.broadcast %cst_39 : f32 to vector<1x8x8xf32>
    %143 = arith.mulf %141, %142 : vector<1x8x8xf32>
    %cst_40 = arith.constant dense<0xFF800000> : vector<1x8xf32>
    %144 = vector.multi_reduction <maximumf>, %143, %cst_40 [2] : vector<1x8x8xf32> to vector<1x8xf32>
    %145 = vector.shape_cast %144 : vector<1x8xf32> to vector<1x8x1xf32>
    %146 = vector.broadcast %145 : vector<1x8x1xf32> to vector<1x8x8xf32>
    %147 = arith.subf %143, %146 : vector<1x8x8xf32>
    %148 = math.exp %147 : vector<1x8x8xf32>
    %149 = arith.truncf %148 : vector<1x8x8xf32> to vector<1x8x8xbf16>
    "tpu.trace_start"() <{level = 10 : i32, message = "bnm,bmd->bnd"}> : () -> ()
    %cst_41 = arith.constant dense<0.000000e+00> : vector<1x8x8xf32>
    %150 = tpu.matmul %149, %140, %cst_41 {dimension_numbers = #tpu.dot_dimension_numbers<[2], [1], [1], [2], [0, 0, 0, 1, 1, 2], [0], [0]>} : vector<1x8x8xbf16>, vector<1x8x8xbf16>, vector<1x8x8xf32> -> vector<1x8x8xf32>
    "tpu.trace_stop"() : () -> ()
    %cst_42 = arith.constant dense<0.000000e+00> : vector<1x8xf32>
    %151 = vector.multi_reduction <add>, %148, %cst_42 [2] : vector<1x8x8xf32> to vector<1x8xf32>
    %152 = vector.shape_cast %151 : vector<1x8xf32> to vector<1x8x1xf32>
    %153 = tpu.reciprocal %152 {approx = true} : vector<1x8x1xf32> -> vector<1x8x1xf32>
    %154 = vector.broadcast %153 : vector<1x8x1xf32> to vector<1x8x8xf32>
    %155 = arith.mulf %150, %154 : vector<1x8x8xf32>
    %156 = vector.shape_cast %155 : vector<1x8x8xf32> to vector<8x8xf32>
    %c0_43 = arith.constant 0 : index
    %c24 = arith.constant 24 : index
    %157 = vector.load %arg10[%c0_43, %c24] : memref<8x32xf32, #tpu.memory_space<vmem>>, vector<8x8xf32>
    tpu.vector_store %arg10[%c0_43, %c24], %156 {strides = array<i32>} : memref<8x32xf32, #tpu.memory_space<vmem>>, vector<8x8xf32>,
    %c0_44 = arith.constant 0 : index
    %c0_45 = arith.constant 0 : index
    %158 = vector.load %arg10[%c0_44, %c0_45] : memref<8x32xf32, #tpu.memory_space<vmem>>, vector<8x32xf32>
    %159 = arith.subf %62, %158 : vector<8x32xf32>
    %160 = arith.truncf %159 : vector<8x32xf32> to vector<8x32xbf16>
    %c0_46 = arith.constant 0 : index
    %c0_47 = arith.constant 0 : index
    %161 = vector.load %arg4[%c0_46, %c0_47] : memref<32x32xbf16, #tpu.memory_space<vmem>>, vector<32x32xbf16>
    %cst_48 = arith.constant dense<0.000000e+00> : vector<8x32xf32>
    %162 = tpu.matmul %160, %161, %cst_48 {dimension_numbers = #tpu.dot_dimension_numbers<[1], [0], [0], [1], [0, 0, 1, 1], [], []>} : vector<8x32xbf16>, vector<32x32xbf16>, vector<8x32xf32> -> vector<8x32xf32>
    %163 = vector.broadcast %5 : vector<1x32xf32> to vector<8x32xf32>
    %164 = arith.addf %162, %163 : vector<8x32xf32>
    %165 = arith.addf %2, %164 : vector<8x32xf32>
    %cst_49 = arith.constant dense<0.000000e+00> : vector<8xf32>
    %166 = vector.multi_reduction <add>, %165, %cst_49 [1] : vector<8x32xf32> to vector<8xf32>
    %167 = vector.shape_cast %166 : vector<8xf32> to vector<8x1xf32>
    %cst_50 = arith.constant 3.200000e+01 : f32
    %168 = vector.broadcast %cst_50 : f32 to vector<8x1xf32>
    %169 = arith.divf %167, %168 : vector<8x1xf32>
    %170 = vector.broadcast %169 : vector<8x1xf32> to vector<8x32xf32>
    %171 = arith.subf %165, %170 : vector<8x32xf32>
    %172 = arith.mulf %171, %171 : vector<8x32xf32>
    %cst_51 = arith.constant dense<0.000000e+00> : vector<8xf32>
    %173 = vector.multi_reduction <add>, %172, %cst_51 [1] : vector<8x32xf32> to vector<8xf32>
    %174 = vector.shape_cast %173 : vector<8xf32> to vector<8x1xf32>
    %cst_52 = arith.constant 3.200000e+01 : f32
    %175 = vector.broadcast %cst_52 : f32 to vector<8x1xf32>
    %176 = arith.divf %174, %175 : vector<8x1xf32>
    %177 = vector.broadcast %169 : vector<8x1xf32> to vector<8x32xf32>
    %178 = arith.subf %165, %177 : vector<8x32xf32>
    %cst_53 = arith.constant 9.99999974E-6 : f32
    %179 = vector.broadcast %cst_53 : f32 to vector<8x1xf32>
    %180 = arith.addf %176, %179 : vector<8x1xf32>
    %181 = math.rsqrt %180 : vector<8x1xf32>
    %182 = vector.broadcast %181 : vector<8x1xf32> to vector<8x32xf32>
    %183 = arith.mulf %178, %182 : vector<8x32xf32>
    %184 = vector.broadcast %8 : vector<1x32xf32> to vector<8x32xf32>
    %185 = arith.mulf %183, %184 : vector<8x32xf32>
    %186 = vector.broadcast %9 : vector<1x32xf32> to vector<8x32xf32>
    %187 = arith.addf %185, %186 : vector<8x32xf32>
    %188 = arith.truncf %187 : vector<8x32xf32> to vector<8x32xbf16>
    %c0_54 = arith.constant 0 : index
    %c0_55 = arith.constant 0 : index
    %189 = vector.load %arg5[%c0_54, %c0_55] : memref<32x64xbf16, #tpu.memory_space<vmem>>, vector<32x64xbf16>
    %cst_56 = arith.constant dense<0.000000e+00> : vector<8x64xf32>
    %190 = tpu.matmul %188, %189, %cst_56 {dimension_numbers = #tpu.dot_dimension_numbers<[1], [0], [0], [1], [0, 0, 1, 1], [], []>} : vector<8x32xbf16>, vector<32x64xbf16>, vector<8x64xf32> -> vector<8x64xf32>
    %191 = vector.broadcast %11 : vector<1x64xf32> to vector<8x64xf32>
    %192 = arith.addf %190, %191 : vector<8x64xf32>
    %cst_57 = arith.constant 5.000000e-01 : f32
    %193 = vector.broadcast %cst_57 : f32 to vector<8x64xf32>
    %194 = arith.mulf %193, %192 : vector<8x64xf32>
    %cst_58 = arith.constant 0.707106769 : f32
    %195 = vector.broadcast %cst_58 : f32 to vector<8x64xf32>
    %196 = arith.mulf %192, %195 : vector<8x64xf32>
    %197 = math.erf %196 : vector<8x64xf32>
    %cst_59 = arith.constant 1.000000e+00 : f32
    %198 = vector.broadcast %cst_59 : f32 to vector<8x64xf32>
    %199 = arith.addf %198, %197 : vector<8x64xf32>
    %200 = arith.mulf %194, %199 : vector<8x64xf32>
    %201 = arith.truncf %200 : vector<8x64xf32> to vector<8x64xbf16>
    %c0_60 = arith.constant 0 : index
    %c0_61 = arith.constant 0 : index
    %202 = vector.load %arg6[%c0_60, %c0_61] : memref<64x32xbf16, #tpu.memory_space<vmem>>, vector<64x32xbf16>
    %cst_62 = arith.constant dense<0.000000e+00> : vector<8x32xf32>
    %203 = tpu.matmul %201, %202, %cst_62 {dimension_numbers = #tpu.dot_dimension_numbers<[1], [0], [0], [1], [0, 0, 1, 1], [], []>} : vector<8x64xbf16>, vector<64x32xbf16>, vector<8x32xf32> -> vector<8x32xf32>
    %204 = vector.broadcast %10 : vector<1x32xf32> to vector<8x32xf32>
    %205 = arith.addf %203, %204 : vector<8x32xf32>
    %206 = arith.addf %165, %205 : vector<8x32xf32>
    %207 = vector.shape_cast %206 : vector<8x32xf32> to vector<1x8x32xf32>
    %c0_63 = arith.constant 0 : index
    %c0_64 = arith.constant 0 : index
    %c0_65 = arith.constant 0 : index
    %208 = vector.load %arg9[%c0_63, %c0_64, %c0_65] : memref<1x8x32xf32, #tpu.memory_space<vmem>>, vector<1x8x32xf32>
    tpu.vector_store %arg9[%c0_63, %c0_64, %c0_65], %207 {strides = array<i32>} : memref<1x8x32xf32, #tpu.memory_space<vmem>>, vector<1x8x32xf32>,
    return
  }
  func.func @transform_0(%arg0: i32) -> (i32, i32, i32) {
    %c0_i32 = arith.constant 0 : i32
    %c0_i32_0 = arith.constant 0 : i32
    %c0_i32_1 = arith.constant 0 : i32
    return %arg0, %c0_i32, %c0_i32_0 : i32, i32, i32
  }
  func.func @transform_1(%arg0: i32) -> (i32, i32) {
    %c0_i32 = arith.constant 0 : i32
    %c0_i32_0 = arith.constant 0 : i32
    %c0_i32_1 = arith.constant 0 : i32
    return %c0_i32, %c0_i32_0 : i32, i32
  }
  func.func @transform_2(%arg0: i32) -> (i32, i32) {
    %c0_i32 = arith.constant 0 : i32
    %c0_i32_0 = arith.constant 0 : i32
    %c0_i32_1 = arith.constant 0 : i32
    return %c0_i32, %c0_i32_0 : i32, i32
  }
  func.func @transform_3(%arg0: i32) -> (i32, i32) {
    %c0_i32 = arith.constant 0 : i32
    %c0_i32_0 = arith.constant 0 : i32
    %c0_i32_1 = arith.constant 0 : i32
    return %c0_i32, %c0_i32_0 : i32, i32
  }
  func.func @transform_4(%arg0: i32) -> (i32, i32) {
    %c0_i32 = arith.constant 0 : i32
    %c0_i32_0 = arith.constant 0 : i32
    %c0_i32_1 = arith.constant 0 : i32
    return %c0_i32, %c0_i32_0 : i32, i32
  }
  func.func @transform_5(%arg0: i32) -> (i32, i32) {
    %c0_i32 = arith.constant 0 : i32
    %c0_i32_0 = arith.constant 0 : i32
    %c0_i32_1 = arith.constant 0 : i32
    return %c0_i32, %c0_i32_0 : i32, i32
  }
  func.func @transform_6(%arg0: i32) -> (i32, i32) {
    %c0_i32 = arith.constant 0 : i32
    %c0_i32_0 = arith.constant 0 : i32
    %c0_i32_1 = arith.constant 0 : i32
    return %c0_i32, %c0_i32_0 : i32, i32
  }
  func.func @transform_7(%arg0: i32) -> (i32, i32) {
    %c0_i32 = arith.constant 0 : i32
    %c0_i32_0 = arith.constant 0 : i32
    %c0_i32_1 = arith.constant 0 : i32
    return %c0_i32, %c0_i32_0 : i32, i32
  }
  func.func @transform_8(%arg0: i32) -> (i32, i32, i32) {
    %c0_i32 = arith.constant 0 : i32
    %c0_i32_0 = arith.constant 0 : i32
    %c0_i32_1 = arith.constant 0 : i32
    return %arg0, %c0_i32, %c0_i32_0 : i32, i32, i32
  }
}

</mosaic_0001>

<llo_original>
// kernel: tpu_custom_call.1
$region0: #{tpu_custom_call.1}
  #allocation0 [shape = 'u32[]', space=smem, size = 0x4, offset = 0x4, fixed_abs, tag = 'smem constant byte address 0x4 - core index']
  #allocation1 [shape = 'u32[144,128]{1,0:T(1,128)}', space=vmem, size = 0x12000, scoped, tag = 'internal scratch']
  #allocation2 [shape = 'f32[8,32]{1,0:T(8,128)}', space=vmem, size = 0x1000, scoped, tag = 'scratch operand']
  %s0 = inlined_call_operand.vmem [shape: bf16[2,8,32], index: 0, kind: input, shape index: {}]
  %s1 = inlined_call_operand.vmem [shape: bf16[64,32], index: 1, kind: input, shape index: {}]
  %s2 = inlined_call_operand.vmem [shape: bf16[32,96], index: 2, kind: input, shape index: {}]
  %s3 = inlined_call_operand.vmem [shape: bf16[32,32], index: 3, kind: input, shape index: {}]
  %s4 = inlined_call_operand.vmem [shape: bf16[32,64], index: 4, kind: input, shape index: {}]
  %s5 = inlined_call_operand.vmem [shape: bf16[64,32], index: 5, kind: input, shape index: {}]
  %s6 = inlined_call_operand.vmem [shape: f32[8,32], index: 6, kind: input, shape index: {}]
  %s7 = inlined_call_operand.vmem [shape: f32[1,64], index: 7, kind: input, shape index: {}]
  %s8 = inlined_call_operand.hbm [shape: f32[2,8,32], index: 8, kind: output, shape index: {}]
  %s9 = sld [smem:[#allocation0]]
  $region65: #{tpu_custom_call.1} parent=0
    _
  %s11 = ssub.s32 1, %s9
  %s12 = scalar_select 0, %s11, %s9
  $region1: #{tpu_custom_call.1} parent=0
    #allocation3 [shape = 'u8[8192]{0}', space=vmem, size = 0x2000, scoped, tag = 'output window, operand 0']
    #allocation4 [shape = 's32[2]{0}', space=sflag, size = 0x8, scoped, tag = 'scoped memory for tpu_custom_call.1']
    %13 = vsyncpa [#allocation4], 0
    %s14 = scalar_lea.sflag [#allocation4], 1
    %15 = vsyncpa %s14, 0
    loop: start=0, step=1, limit=4
    $region2: #{tpu_custom_call.1} parent=1 // loop_pre_header
      _
    $region3: #{tpu_custom_call.1} parent=1 // loop_header
      %s17 = sphi 0, %s21
      %p18 = scmp.ge.s32.totalorder %s17, 4
      %s27 = sphi 0, %s29
      %s30 = sphi 0, %s27
      %s31 = sphi 0, %s30
      %s47 = sphi 0, %s31
      %s51 = sphi 0, %s51
      %s53 = sphi 0, %s51
      %s54 = sphi 0, %s53
      %s68 = sphi 0, %s54
      %s72 = sphi 0, %s72
      %s74 = sphi 0, %s72
      %s75 = sphi 0, %s74
      %s89 = sphi 0, %s75
      %s93 = sphi 0, %s93
      %s95 = sphi 0, %s93
      %s96 = sphi 0, %s95
      %s110 = sphi 0, %s96
      %s114 = sphi 0, %s114
      %s116 = sphi 0, %s114
      %s117 = sphi 0, %s116
      %s131 = sphi 0, %s117
      %s135 = sphi 0, %s135
      %s137 = sphi 0, %s135
      %s138 = sphi 0, %s137
      %s152 = sphi 0, %s138
      %s156 = sphi 0, %s156
      %s158 = sphi 0, %s156
      %s159 = sphi 0, %s158
      %s173 = sphi 0, %s159
      %s177 = sphi 0, %s177
      %s179 = sphi 0, %s177
      %s180 = sphi 0, %s179
      %s194 = sphi 0, %s180
      %s200 = sphi 0, %s202
      %s203 = sphi 0, %s200
      %s204 = sphi 0, %s203
      %s220 = sphi 0, %s204
    $region4: #{tpu_custom_call.1} parent=1 // loop_header_branch
      %20 = sbr.rel (%p18) target = $region8
    $region5: #{tpu_custom_call.1} parent=1 // loop_body
      %s22 = ssub.s32 %s17, 1
      %s23 = ssub.s32 %s17, 2
      %s24 = sadd.s32 %s17, 1
      %s25 = ssub.s32 %s17, %s24
      %p26 = scmp.eq.s32.totalorder %s25, 0
      %s28 = sadd.s32 %s27, 1
      %s29 = scalar_select %p26, %s27, %s28
      %p32 = pneg %p26
      %p33 = scmp.eq.s32.totalorder %s17, 1
      %p34 = por %p32, %p33
      %p35 = scmp.ne.s32.totalorder %s27, %s30
      %p36 = scmp.eq.s32.totalorder %s17, 0
      %p37 = por %p35, %p36
      %p38 = scmp.ne.s32.totalorder %s27, %s30
      %p39 = scmp.eq.s32.totalorder %s22, 1
      %p40 = por %p38, %p39
      %p41 = scmp.ne.s32.totalorder %s30, %s31
      %p42 = scmp.eq.s32.totalorder %s22, 0
      %p43 = por %p41, %p42
      %p44 = scmp.ne.s32.totalorder %s30, %s31
      %p45 = scmp.eq.s32.totalorder %s23, 1
      %p46 = por %p44, %p45
      %p48 = scmp.ne.s32.totalorder %s31, %s47
      %p49 = scmp.eq.s32.totalorder %s23, 0
      %p50 = por %p48, %p49
      %s52 = sadd.s32 %s51, 1
      %p55 = scmp.eq.s32.totalorder %s17, 1
      %p56 = scmp.ne.s32.totalorder %s51, %s53
      %p57 = scmp.eq.s32.totalorder %s17, 0
      %p58 = por %p56, %p57
      %p59 = scmp.ne.s32.totalorder %s51, %s53
      %p60 = scmp.eq.s32.totalorder %s22, 1
      %p61 = por %p59, %p60
      %p62 = scmp.ne.s32.totalorder %s53, %s54
      %p63 = scmp.eq.s32.totalorder %s22, 0
      %p64 = por %p62, %p63
      %p65 = scmp.ne.s32.totalorder %s53, %s54
      %p66 = scmp.eq.s32.totalorder %s23, 1
      %p67 = por %p65, %p66
      %p69 = scmp.ne.s32.totalorder %s54, %s68
      %p70 = scmp.eq.s32.totalorder %s23, 0
      %p71 = por %p69, %p70
      %s73 = sadd.s32 %s72, 1
      %p76 = scmp.eq.s32.totalorder %s17, 1
      %p77 = scmp.ne.s32.totalorder %s72, %s74
      %p78 = scmp.eq.s32.totalorder %s17, 0
      %p79 = por %p77, %p78
      %p80 = scmp.ne.s32.totalorder %s72, %s74
      %p81 = scmp.eq.s32.totalorder %s22, 1
      %p82 = por %p80, %p81
      %p83 = scmp.ne.s32.totalorder %s74, %s75
      %p84 = scmp.eq.s32.totalorder %s22, 0
      %p85 = por %p83, %p84
      %p86 = scmp.ne.s32.totalorder %s74, %s75
      %p87 = scmp.eq.s32.totalorder %s23, 1
      %p88 = por %p86, %p87
      %p90 = scmp.ne.s32.totalorder %s75, %s89
      %p91 = scmp.eq.s32.totalorder %s23, 0
      %p92 = por %p90, %p91
      %s94 = sadd.s32 %s93, 1
      %p97 = scmp.eq.s32.totalorder %s17, 1
      %p98 = scmp.ne.s32.totalorder %s93, %s95
      %p99 = scmp.eq.s32.totalorder %s17, 0
      %p100 = por %p98, %p99
      %p101 = scmp.ne.s32.totalorder %s93, %s95
      %p102 = scmp.eq.s32.totalorder %s22, 1
      %p103 = por %p101, %p102
      %p104 = scmp.ne.s32.totalorder %s95, %s96
      %p105 = scmp.eq.s32.totalorder %s22, 0
      %p106 = por %p104, %p105
      %p107 = scmp.ne.s32.totalorder %s95, %s96
      %p108 = scmp.eq.s32.totalorder %s23, 1
      %p109 = por %p107, %p108
      %p111 = scmp.ne.s32.totalorder %s96, %s110
      %p112 = scmp.eq.s32.totalorder %s23, 0
      %p113 = por %p111, %p112
      %s115 = sadd.s32 %s114, 1
      %p118 = scmp.eq.s32.totalorder %s17, 1
      %p119 = scmp.ne.s32.totalorder %s114, %s116
      %p120 = scmp.eq.s32.totalorder %s17, 0
      %p121 = por %p119, %p120
      %p122 = scmp.ne.s32.totalorder %s114, %s116
      %p123 = scmp.eq.s32.totalorder %s22, 1
      %p124 = por %p122, %p123
      %p125 = scmp.ne.s32.totalorder %s116, %s117
      %p126 = scmp.eq.s32.totalorder %s22, 0
      %p127 = por %p125, %p126
      %p128 = scmp.ne.s32.totalorder %s116, %s117
      %p129 = scmp.eq.s32.totalorder %s23, 1
      %p130 = por %p128, %p129
      %p132 = scmp.ne.s32.totalorder %s117, %s131
      %p133 = scmp.eq.s32.totalorder %s23, 0
      %p134 = por %p132, %p133
      %s136 = sadd.s32 %s135, 1
      %p139 = scmp.eq.s32.totalorder %s17, 1
      %p140 = scmp.ne.s32.totalorder %s135, %s137
      %p141 = scmp.eq.s32.totalorder %s17, 0
      %p142 = por %p140, %p141
      %p143 = scmp.ne.s32.totalorder %s135, %s137
      %p144 = scmp.eq.s32.totalorder %s22, 1
      %p145 = por %p143, %p144
      %p146 = scmp.ne.s32.totalorder %s137, %s138
      %p147 = scmp.eq.s32.totalorder %s22, 0
      %p148 = por %p146, %p147
      %p149 = scmp.ne.s32.totalorder %s137, %s138
      %p150 = scmp.eq.s32.totalorder %s23, 1
      %p151 = por %p149, %p150
      %p153 = scmp.ne.s32.totalorder %s138, %s152
      %p154 = scmp.eq.s32.totalorder %s23, 0
      %p155 = por %p153, %p154
      %s157 = sadd.s32 %s156, 1
      %p160 = scmp.eq.s32.totalorder %s17, 1
      %p161 = scmp.ne.s32.totalorder %s156, %s158
      %p162 = scmp.eq.s32.totalorder %s17, 0
      %p163 = por %p161, %p162
      %p164 = scmp.ne.s32.totalorder %s156, %s158
      %p165 = scmp.eq.s32.totalorder %s22, 1
      %p166 = por %p164, %p165
      %p167 = scmp.ne.s32.totalorder %s158, %s159
      %p168 = scmp.eq.s32.totalorder %s22, 0
      %p169 = por %p167, %p168
      %p170 = scmp.ne.s32.totalorder %s158, %s159
      %p171 = scmp.eq.s32.totalorder %s23, 1
      %p172 = por %p170, %p171
      %p174 = scmp.ne.s32.totalorder %s159, %s173
      %p175 = scmp.eq.s32.totalorder %s23, 0
      %p176 = por %p174, %p175
      %s178 = sadd.s32 %s177, 1
      %p181 = scmp.eq.s32.totalorder %s17, 1
      %p182 = scmp.ne.s32.totalorder %s177, %s179
      %p183 = scmp.eq.s32.totalorder %s17, 0
      %p184 = por %p182, %p183
      %p185 = scmp.ne.s32.totalorder %s177, %s179
      %p186 = scmp.eq.s32.totalorder %s22, 1
      %p187 = por %p185, %p186
      %p188 = scmp.ne.s32.totalorder %s179, %s180
      %p189 = scmp.eq.s32.totalorder %s22, 0
      %p190 = por %p188, %p189
      %p191 = scmp.ne.s32.totalorder %s179, %s180
      %p192 = scmp.eq.s32.totalorder %s23, 1
      %p193 = por %p191, %p192
      %p195 = scmp.ne.s32.totalorder %s180, %s194
      %p196 = scmp.eq.s32.totalorder %s23, 0
      %p197 = por %p195, %p196
      %s198 = ssub.s32 %s17, %s24
      %p199 = scmp.eq.s32.totalorder %s198, 0
      %s201 = sadd.s32 %s200, 1
      %s202 = scalar_select %p199, %s200, %s201
      %p205 = pneg %p199
      %p206 = scmp.eq.s32.totalorder %s17, 1
      %p207 = por %p205, %p206
      %p208 = scmp.ne.s32.totalorder %s200, %s203
      %p209 = scmp.eq.s32.totalorder %s17, 0
      %p210 = por %p208, %p209
      %p211 = scmp.ne.s32.totalorder %s200, %s203
      %p212 = scmp.eq.s32.totalorder %s22, 1
      %p213 = por %p211, %p212
      %p214 = scmp.ne.s32.totalorder %s203, %s204
      %p215 = scmp.eq.s32.totalorder %s22, 0
      %p216 = por %p214, %p215
      %p217 = scmp.ne.s32.totalorder %s203, %s204
      %p218 = scmp.eq.s32.totalorder %s23, 1
      %p219 = por %p217, %p218
      %p221 = scmp.ne.s32.totalorder %s204, %s220
      %p222 = scmp.eq.s32.totalorder %s23, 0
      %p223 = por %p221, %p222
      %p224 = scmp.le.s32.totalorder 1, %s17
      %p225 = scmp.lt.s32.totalorder %s17, 3
      %p226 = pnand %p224, %p225
      %p227 = pneg %p226
      // Predicated region
      $region9: #{tpu_custom_call.1} parent=5 // pred_check
        _
      $region10: #{tpu_custom_call.1} parent=5 // pred_check_branch
        %229 = sbr.rel (%p226) target = $region12
      $region11: #{tpu_custom_call.1} parent=5 // pred_region
        %s230 = ssub.s32 %s17, 1
        // Predicated region
        $region13: #{tpu_custom_call.1} parent=11 // pred_check
          %p231 = pneg %p64
        $region14: #{tpu_custom_call.1} parent=11 // pred_check_branch
          %233 = sbr.rel (%p231) target = $region16
        $region15: #{tpu_custom_call.1} parent=11 // pred_region
          _
        $region16: #{tpu_custom_call.1} parent=11 // pred_fallthru
          _
        // Predicated region
        $region17: #{tpu_custom_call.1} parent=11 // pred_check
          %p234 = pneg %p85
        $region18: #{tpu_custom_call.1} parent=11 // pred_check_branch
          %236 = sbr.rel (%p234) target = $region20
        $region19: #{tpu_custom_call.1} parent=11 // pred_region
          _
        $region20: #{tpu_custom_call.1} parent=11 // pred_fallthru
          _
        // Predicated region
        $region21: #{tpu_custom_call.1} parent=11 // pred_check
          %p237 = pneg %p106
        $region22: #{tpu_custom_call.1} parent=11 // pred_check_branch
          %239 = sbr.rel (%p237) target = $region24
        $region23: #{tpu_custom_call.1} parent=11 // pred_region
          _
        $region24: #{tpu_custom_call.1} parent=11 // pred_fallthru
          _
        // Predicated region
        $region25: #{tpu_custom_call.1} parent=11 // pred_check
          %p240 = pneg %p127
        $region26: #{tpu_custom_call.1} parent=11 // pred_check_branch
          %242 = sbr.rel (%p240) target = $region28
        $region27: #{tpu_custom_call.1} parent=11 // pred_region
          _
        $region28: #{tpu_custom_call.1} parent=11 // pred_fallthru
          _
        // Predicated region
        $region29: #{tpu_custom_call.1} parent=11 // pred_check
          %p243 = pneg %p148
        $region30: #{tpu_custom_call.1} parent=11 // pred_check_branch
          %245 = sbr.rel (%p243) target = $region32
        $region31: #{tpu_custom_call.1} parent=11 // pred_region
          _
        $region32: #{tpu_custom_call.1} parent=11 // pred_fallthru
          _
        // Predicated region
        $region33: #{tpu_custom_call.1} parent=11 // pred_check
          %p246 = pneg %p169
        $region34: #{tpu_custom_call.1} parent=11 // pred_check_branch
          %248 = sbr.rel (%p246) target = $region36
        $region35: #{tpu_custom_call.1} parent=11 // pred_region
          _
        $region36: #{tpu_custom_call.1} parent=11 // pred_fallthru
          _
        // Predicated region
        $region37: #{tpu_custom_call.1} parent=11 // pred_check
          %p249 = pneg %p190
        $region38: #{tpu_custom_call.1} parent=11 // pred_check_branch
          %251 = sbr.rel (%p249) target = $region40
        $region39: #{tpu_custom_call.1} parent=11 // pred_region
          _
        $region40: #{tpu_custom_call.1} parent=11 // pred_fallthru
          _
      $region12: #{tpu_custom_call.1} parent=5 // pred_fallthru
        _
      %p252 = scmp.lt.s32.totalorder %s17, 2
      // Predicated region
      $region41: #{tpu_custom_call.1} parent=5 // pred_check
        %p253 = pneg %p252
      $region42: #{tpu_custom_call.1} parent=5 // pred_check_branch
        %255 = sbr.rel (%p253) target = $region44
      $region43: #{tpu_custom_call.1} parent=5 // pred_region
        // Predicated region
        $region45: #{tpu_custom_call.1} parent=43 // pred_check
          %p256 = pneg %p37
        $region46: #{tpu_custom_call.1} parent=43 // pred_check_branch
          %258 = sbr.rel (%p256) target = $region48
        $region47: #{tpu_custom_call.1} parent=43 // pred_region
          %p259 = scmp.lt.s32.totalorder %s17, 1
          %s260 = scalar_select %p259, %s17, 1
          %s261 = smul.addr %s260, 4
          %s262 = scalar_lea.vmem %s0, %s261
        $region48: #{tpu_custom_call.1} parent=43 // pred_fallthru
          _
      $region44: #{tpu_custom_call.1} parent=5 // pred_fallthru
        _
      %p263 = scmp.le.s32.totalorder 1, %s17
      %p264 = scmp.lt.s32.totalorder %s17, 3
      %p265 = pnand %p263, %p264
      %p266 = pneg %p265
      // Predicated region
      $region49: #{tpu_custom_call.1} parent=5 // pred_check
        _
      $region50: #{tpu_custom_call.1} parent=5 // pred_check_branch
        %268 = sbr.rel (%p265) target = $region52
      $region51: #{tpu_custom_call.1} parent=5 // pred_region
        %s269 = ssub.s32 %s17, 1
        %p270 = scmp.lt.s32.totalorder %s22, 1
        %s271 = scalar_select %p270, %s22, 1
        %s272 = smul.addr %s271, 4
        %s273 = scalar_lea.vmem %s0, %s272
        %p274 = pneg %p43
        %p275 = pneg %p40
        %p276 = pneg %p64
        %p277 = pneg %p61
        %p278 = pneg %p85
        %p279 = pneg %p82
        %p280 = pneg %p106
        %p281 = pneg %p103
        %p282 = pneg %p127
        %p283 = pneg %p124
        %p284 = pneg %p148
        %p285 = pneg %p145
        %p286 = pneg %p169
        %p287 = pneg %p166
        %p288 = pneg %p190
        %p289 = pneg %p187
        %p290 = pneg %p216
        %p291 = pneg %p213
        %s292 = sand.u32 %s203, 1
        %s293 = scalar_lea.sflag [#allocation4], %s292
        %s294 = sand.u32 %s203, 1
        %s295 = smul.addr %s294, 8
        %s296 = scalar_lea.vmem [#allocation3], %s295
        %p297 = scmp.lt.s32.totalorder %s22, 1
        %s298 = scalar_select %p297, %s22, 1
        %s299 = smul.addr %s298, 4
        %s300 = scalar_lea.vmem %s0, %s299
        %v302 = vld [vmem:[%s300] sm:$0xf]
        %v303 = vunpack.c.l.bf16 %v302
        %v304 = vld [vmem:[%s6] sm:$0xff]
        %v305 = vld [vmem:[%s7] sm:$0x1]
        %vm306 = vcmask 261120
        %v307 = vsel %vm306, %v303, 0.0
        %308 = vadd.xlane.f32.xlu0 %v307
        %v309 = vpop.xlane.xlu0 %308
        %v310 = vrcp.pop 32.0
        %v311 = vmul.f32 %v309, %v310
        %v312 = vsub.f32 %v303, %v311
        %v313 = vmul.f32 %v312, %v312
        %v314 = vsel %vm306, %v313, 0.0
        %315 = vadd.xlane.f32.xlu0 %v314
        %v316 = vpop.xlane.xlu0 %315
        %v317 = vmul.f32 %v316, %v310
        %v318 = vadd.f32 %v317, 1e-05
        %v319 = vrsqrt.pop %v318
        %v320 = vmul.f32 %v312, %v319
        %v321 = vlaneseq
        %v322 = vshrl.u32 %v321, 7
        %v323 = vsub.s32 2, %v322
        %v324 = vrot.slane %v304, %v323
        %v325 = vmul.f32 %v320, %v324
        %v326 = vlaneseq
        %v327 = vshrl.u32 %v326, 7
        %v328 = vsub.s32 3, %v327
        %v329 = vrot.slane %v304, %v328
        %v330 = vadd.f32 %v325, %v329
        %v331 = vpack.c.bf16 %v330, %v330
        %v332 = vld [vmem:[%s2] sm:$0xf]
        %v333 = vld [vmem:[%s2 + $0x4] sm:$0xf]
        %v334 = vld [vmem:[%s2 + $0x8] sm:$0xf]
        %v335 = vld [vmem:[%s2 + $0xc] sm:$0xf]
        %v340 = vunpack.c.l.b16 %v332
        %v341 = vunpack.c.l.b16 %v333
        %v342 = vunpack.c.l.b16 %v334
        %v343 = vunpack.c.l.b16 %v335
        %v344 = vpack.c.b16 %v341, %v340
        %v345 = vpack.c.b16 %v343, %v342
        %v349 = vsel %vm306, %v331, 0
        %351 = vmatprep.subr.bf16.mxu0 0
        %352 = vmatpush1.bf16.msra.mxu0 %v344
        %353 = vmatprep.subr.bf16.mxu0 0
        %354 = vmatpush1.bf16.msra.mxu0 %v345
        %355 = vmatprep.subr.bf16.mxu0 0
        %356 = vmatpush1.bf16.msra.mxu0 0
        %357 = vmatprep.subr.bf16.mxu0 0
        %358 = vmatpush1.bf16.msra.mxu0 0
        %359 = vmatprep.subr.bf16.mxu0 0
        %360 = vmatpush1.bf16.msra.mxu0 0
        %361 = vmatprep.subr.bf16.mxu0 0
        %362 = vmatpush1.bf16.msra.mxu0 0
        %363 = vmatprep.subr.bf16.mxu0 0
        %364 = vmatpush1.bf16.msra.mxu0 0
        %365 = vmatprep.subr.bf16.mxu0 0
        %366 = vmatpush1.bf16.msra.mxu0 0
        %367 = vmatprep.subr.bf16.mxu0 0
        %368 = vmatpush1.bf16.msra.mxu0 0
        %369 = vmatprep.subr.bf16.mxu0 0
        %370 = vmatpush1.bf16.msra.mxu0 0
        %371 = vmatprep.subr.bf16.mxu0 0
        %372 = vmatpush1.bf16.msra.mxu0 0
        %373 = vmatprep.subr.bf16.mxu0 0
        %374 = vmatpush1.bf16.msra.mxu0 0
        %375 = vmatprep.subr.bf16.mxu0 0
        %376 = vmatpush1.bf16.msra.mxu0 0
        %377 = vmatprep.subr.bf16.mxu0 0
        %378 = vmatpush1.bf16.msra.mxu0 0
        %379 = vmatprep.subr.bf16.mxu0 0
        %380 = vmatpush1.bf16.msra.mxu0 0
        %381 = vmatprep.subr.bf16.mxu0 0
        %382 = vmatpush1.bf16.msra.mxu0 0
        %383 = vmatprep.mubr.bf16.mxu0 0
        %384 = vmatmul.mubr.bf16.gmra.mrb[0].mxu0 %v349
        %v385 = vpop.f32.mrb[0].mxu0
        %v386 = vadd.f32 0.0, %v385
        %v387 = vpop.f32.mrb[0].mxu0
        %v388 = vpop.f32.mrb[0].mxu0
        %v389 = vpop.f32.mrb[0].mxu0
        %390 = vdwg.mxu0
        %v391 = vlaneseq
        %v392 = vshrl.u32 %v391, 7
        %vm393 = vcmp.eq.s32.totalorder %v392, 0
        %v394 = vrot.slane %v330, 7
        %v395 = vsel %vm393, 1, 0
        %vm396 = vcmp.eq.s32.totalorder %v395, 1
        %v397 = vsel %vm396, 0.0, %v394
        %vm398 = vcmp.eq.s32.totalorder %v392, 7
        %v399 = vrot.slane %v330, 1
        %v400 = vsel %vm398, 1, 0
        %vm401 = vcmp.eq.s32.totalorder %v400, 1
        %v402 = vsel %vm401, 0.0, %v399
        %404 = vrot.lane.b32.xlu0 %v402, 32
        %v405 = vpop.permute.xlu0 %404
        %v407 = vsel %vm306, %v397, %v405
        %v408 = vpack.c.bf16 %v407, %v407
        %v409 = vld [vmem:[%s1] sm:$0xf]
        %v410 = vld [vmem:[%s1 + $0x4] sm:$0xf]
        %v411 = vld [vmem:[%s1 + $0x8] sm:$0xf]
        %v412 = vld [vmem:[%s1 + $0xc] sm:$0xf]
        %v413 = vld [vmem:[%s1 + $0x10] sm:$0xf]
        %v414 = vld [vmem:[%s1 + $0x14] sm:$0xf]
        %v415 = vld [vmem:[%s1 + $0x18] sm:$0xf]
        %v416 = vld [vmem:[%s1 + $0x1c] sm:$0xf]
        %v425 = vunpack.c.l.b16 %v409
        %v426 = vunpack.c.l.b16 %v410
        %v427 = vunpack.c.l.b16 %v411
        %v428 = vunpack.c.l.b16 %v412
        %v429 = vunpack.c.l.b16 %v413
        %v430 = vunpack.c.l.b16 %v414
        %v431 = vunpack.c.l.b16 %v415
        %v432 = vunpack.c.l.b16 %v416
        %v433 = vpack.c.b16 %v426, %v425
        %v434 = vpack.c.b16 %v428, %v427
        %v435 = vpack.c.b16 %v430, %v429
        %v436 = vpack.c.b16 %v432, %v431
        %vm441 = vcmask 523264
        %v443 = vsel %vm441, %v408, 0
        %445 = vmatprep.subr.bf16.mxu0 0
        %446 = vmatpush1.bf16.msra.mxu0 %v433
        %447 = vmatprep.subr.bf16.mxu0 0
        %448 = vmatpush1.bf16.msra.mxu0 %v434
        %449 = vmatprep.subr.bf16.mxu0 0
        %450 = vmatpush1.bf16.msra.mxu0 %v435
        %451 = vmatprep.subr.bf16.mxu0 0
        %452 = vmatpush1.bf16.msra.mxu0 %v436
        %453 = vmatprep.subr.bf16.mxu0 0
        %454 = vmatpush1.bf16.msra.mxu0 0
        %455 = vmatprep.subr.bf16.mxu0 0
        %456 = vmatpush1.bf16.msra.mxu0 0
        %457 = vmatprep.subr.bf16.mxu0 0
        %458 = vmatpush1.bf16.msra.mxu0 0
        %459 = vmatprep.subr.bf16.mxu0 0
        %460 = vmatpush1.bf16.msra.mxu0 0
        %461 = vmatprep.subr.bf16.mxu0 0
        %462 = vmatpush1.bf16.msra.mxu0 0
        %463 = vmatprep.subr.bf16.mxu0 0
        %464 = vmatpush1.bf16.msra.mxu0 0
        %465 = vmatprep.subr.bf16.mxu0 0
        %466 = vmatpush1.bf16.msra.mxu0 0
        %467 = vmatprep.subr.bf16.mxu0 0
        %468 = vmatpush1.bf16.msra.mxu0 0
        %469 = vmatprep.subr.bf16.mxu0 0
        %470 = vmatpush1.bf16.msra.mxu0 0
        %471 = vmatprep.subr.bf16.mxu0 0
        %472 = vmatpush1.bf16.msra.mxu0 0
        %473 = vmatprep.subr.bf16.mxu0 0
        %474 = vmatpush1.bf16.msra.mxu0 0
        %475 = vmatprep.subr.bf16.mxu0 0
        %476 = vmatpush1.bf16.msra.mxu0 0
        %477 = vmatprep.mubr.bf16.mxu0 0
        %478 = vmatmul.mubr.bf16.gmra.mrb[0].mxu0 %v443
        %v479 = vpop.f32.mrb[0].mxu0
        %v480 = vadd.f32 %v386, %v479
        %v481 = vpop.f32.mrb[0].mxu0
        %v482 = vpop.f32.mrb[0].mxu0
        %v483 = vpop.f32.mrb[0].mxu0
        %484 = vdwg.mxu0
        %v485 = vlaneseq
        %v486 = vshrl.u32 %v485, 7
        %v487 = vsub.s32 0, %v486
        %v488 = vrot.slane %v304, %v487
        %v489 = vadd.f32 %v480, %v488
        %v490 = vpack.c.bf16 %v489, %v489
        %v491 = vpack.c.bf16 %v386, %v386
        %493 = vrot.lane.b32.xlu0 %v491, 96
        %v494 = vpop.permute.xlu0 %493
        %vm495 = vcmask 64512
        %v497 = vsel %vm495, %v490, 0
        %v500 = vsel %vm495, %v494, 0
        %502 = vmatprep.subr.bf16.mxu0 0
        %503 = vmatpush1.bf16.xpose.msra.mxu0 %v500
        %504 = vmatprep.subr.bf16.mxu0 0
        %505 = vmatpush1.bf16.xpose.msra.mxu0 0
        %506 = vmatprep.subr.bf16.mxu0 0
        %507 = vmatpush1.bf16.xpose.msra.mxu0 0
        %508 = vmatprep.subr.bf16.mxu0 0
        %509 = vmatpush1.bf16.xpose.msra.mxu0 0
        %510 = vmatprep.subr.bf16.mxu0 0
        %511 = vmatpush1.bf16.xpose.msra.mxu0 0
        %512 = vmatprep.subr.bf16.mxu0 0
        %513 = vmatpush1.bf16.xpose.msra.mxu0 0
        %514 = vmatprep.subr.bf16.mxu0 0
        %515 = vmatpush1.bf16.xpose.msra.mxu0 0
        %516 = vmatprep.subr.bf16.mxu0 0
        %517 = vmatpush1.bf16.xpose.msra.mxu0 0
        %518 = vmatprep.subr.bf16.mxu0 0
        %519 = vmatpush1.bf16.xpose.msra.mxu0 0
        %520 = vmatprep.subr.bf16.mxu0 0
        %521 = vmatpush1.bf16.xpose.msra.mxu0 0
        %522 = vmatprep.subr.bf16.mxu0 0
        %523 = vmatpush1.bf16.xpose.msra.mxu0 0
        %524 = vmatprep.subr.bf16.mxu0 0
        %525 = vmatpush1.bf16.xpose.msra.mxu0 0
        %526 = vmatprep.subr.bf16.mxu0 0
        %527 = vmatpush1.bf16.xpose.msra.mxu0 0
        %528 = vmatprep.subr.bf16.mxu0 0
        %529 = vmatpush1.bf16.xpose.msra.mxu0 0
        %530 = vmatprep.subr.bf16.mxu0 0
        %531 = vmatpush1.bf16.xpose.msra.mxu0 0
        %532 = vmatprep.subr.bf16.mxu0 0
        %533 = vmatpush1.bf16.xpose.msra.mxu0 0
        %534 = vmatprep.mubr.bf16.mxu0 0
        %535 = vmatmul.mubr.bf16.gmra.mrb[0].mxu0 %v497
        %v536 = vpop.f32.mrb[0].mxu0
        %v537 = vadd.f32 0.0, %v536
        %v538 = vpop.f32.mrb[0].mxu0
        %v539 = vpop.f32.mrb[0].mxu0
        %v540 = vpop.f32.mrb[0].mxu0
        %541 = vdwg.mxu0
        %v542 = vmul.f32 %v537, 0.35355338
        %v543 = vsel %vm495, %v542, -inf
        %544 = vmax.xlane.f32.xlu0 %v543
        %v545 = vpop.xlane.xlu0 %544
        %v546 = vsub.f32 %v542, %v545
        %v547 = vmul.f32 %v546, 1.442695
        %v548 = vpow.pop %v547
        %v549 = vpack.c.bf16 %v548, %v548
        %550 = vrot.lane.b32.xlu0 %v491, 64
        %v551 = vpop.permute.xlu0 %550
        %v553 = vsel %vm495, %v549, 0
        %vm555 = vcmask 1043456
        %v557 = vsel %vm555, %v551, 0
        %559 = vmatprep.subr.bf16.mxu0 0
        %560 = vmatpush1.bf16.msra.mxu0 %v557
        %561 = vmatprep.subr.bf16.mxu0 0
        %562 = vmatpush1.bf16.msra.mxu0 0
        %563 = vmatprep.subr.bf16.mxu0 0
        %564 = vmatpush1.bf16.msra.mxu0 0
        %565 = vmatprep.subr.bf16.mxu0 0
        %566 = vmatpush1.bf16.msra.mxu0 0
        %567 = vmatprep.subr.bf16.mxu0 0
        %568 = vmatpush1.bf16.msra.mxu0 0
        %569 = vmatprep.subr.bf16.mxu0 0
        %570 = vmatpush1.bf16.msra.mxu0 0
        %571 = vmatprep.subr.bf16.mxu0 0
        %572 = vmatpush1.bf16.msra.mxu0 0
        %573 = vmatprep.subr.bf16.mxu0 0
        %574 = vmatpush1.bf16.msra.mxu0 0
        %575 = vmatprep.subr.bf16.mxu0 0
        %576 = vmatpush1.bf16.msra.mxu0 0
        %577 = vmatprep.subr.bf16.mxu0 0
        %578 = vmatpush1.bf16.msra.mxu0 0
        %579 = vmatprep.subr.bf16.mxu0 0
        %580 = vmatpush1.bf16.msra.mxu0 0
        %581 = vmatprep.subr.bf16.mxu0 0
        %582 = vmatpush1.bf16.msra.mxu0 0
        %583 = vmatprep.subr.bf16.mxu0 0
        %584 = vmatpush1.bf16.msra.mxu0 0
        %585 = vmatprep.subr.bf16.mxu0 0
        %586 = vmatpush1.bf16.msra.mxu0 0
        %587 = vmatprep.subr.bf16.mxu0 0
        %588 = vmatpush1.bf16.msra.mxu0 0
        %589 = vmatprep.subr.bf16.mxu0 0
        %590 = vmatpush1.bf16.msra.mxu0 0
        %591 = vmatprep.mubr.bf16.mxu0 0
        %592 = vmatmul.mubr.bf16.gmra.mrb[0].mxu0 %v553
        %v593 = vpop.f32.mrb[0].mxu0
        %v594 = vadd.f32 0.0, %v593
        %v595 = vpop.f32.mrb[0].mxu0
        %v596 = vpop.f32.mrb[0].mxu0
        %v597 = vpop.f32.mrb[0].mxu0
        %598 = vdwg.mxu0
        %v599 = vsel %vm495, %v548, 0.0
        %600 = vadd.xlane.f32.xlu0 %v599
        %v601 = vpop.xlane.xlu0 %600
        %v602 = vrcp.pop %v601
        %v603 = vmul.f32 %v594, %v602
        %604 = vst.msk [vmem:[#allocation2] sm:$0xff] %vm495, %v603
        %606 = vrot.lane.b32.xlu0 %v490, 120
        %v607 = vpop.permute.xlu0 %606
        %608 = vrot.lane.b32.xlu0 %v491, 88
        %v609 = vpop.permute.xlu0 %608
        %v611 = vsel %vm495, %v607, 0
        %v614 = vsel %vm495, %v609, 0
        %616 = vmatprep.subr.bf16.mxu0 0
        %617 = vmatpush1.bf16.xpose.msra.mxu0 %v614
        %618 = vmatprep.subr.bf16.mxu0 0
        %619 = vmatpush1.bf16.xpose.msra.mxu0 0
        %620 = vmatprep.subr.bf16.mxu0 0
        %621 = vmatpush1.bf16.xpose.msra.mxu0 0
        %622 = vmatprep.subr.bf16.mxu0 0
        %623 = vmatpush1.bf16.xpose.msra.mxu0 0
        %624 = vmatprep.subr.bf16.mxu0 0
        %625 = vmatpush1.bf16.xpose.msra.mxu0 0
        %626 = vmatprep.subr.bf16.mxu0 0
        %627 = vmatpush1.bf16.xpose.msra.mxu0 0
        %628 = vmatprep.subr.bf16.mxu0 0
        %629 = vmatpush1.bf16.xpose.msra.mxu0 0
        %630 = vmatprep.subr.bf16.mxu0 0
        %631 = vmatpush1.bf16.xpose.msra.mxu0 0
        %632 = vmatprep.subr.bf16.mxu0 0
        %633 = vmatpush1.bf16.xpose.msra.mxu0 0
        %634 = vmatprep.subr.bf16.mxu0 0
        %635 = vmatpush1.bf16.xpose.msra.mxu0 0
        %636 = vmatprep.subr.bf16.mxu0 0
        %637 = vmatpush1.bf16.xpose.msra.mxu0 0
        %638 = vmatprep.subr.bf16.mxu0 0
        %639 = vmatpush1.bf16.xpose.msra.mxu0 0
        %640 = vmatprep.subr.bf16.mxu0 0
        %641 = vmatpush1.bf16.xpose.msra.mxu0 0
        %642 = vmatprep.subr.bf16.mxu0 0
        %643 = vmatpush1.bf16.xpose.msra.mxu0 0
        %644 = vmatprep.subr.bf16.mxu0 0
        %645 = vmatpush1.bf16.xpose.msra.mxu0 0
        %646 = vmatprep.subr.bf16.mxu0 0
        %647 = vmatpush1.bf16.xpose.msra.mxu0 0
        %648 = vmatprep.mubr.bf16.mxu0 0
        %649 = vmatmul.mubr.bf16.gmra.mrb[0].mxu0 %v611
        %v650 = vpop.f32.mrb[0].mxu0
        %v651 = vadd.f32 0.0, %v650
        %v652 = vpop.f32.mrb[0].mxu0
        %v653 = vpop.f32.mrb[0].mxu0
        %v654 = vpop.f32.mrb[0].mxu0
        %655 = vdwg.mxu0
        %v656 = vmul.f32 %v651, 0.35355338
        %v657 = vsel %vm495, %v656, -inf
        %658 = vmax.xlane.f32.xlu0 %v657
        %v659 = vpop.xlane.xlu0 %658
        %v660 = vsub.f32 %v656, %v659
        %v661 = vmul.f32 %v660, 1.442695
        %v662 = vpow.pop %v661
        %v663 = vpack.c.bf16 %v662, %v662
        %664 = vrot.lane.b32.xlu0 %v491, 56
        %v665 = vpop.permute.xlu0 %664
        %v667 = vsel %vm495, %v663, 0
        %v670 = vsel %vm555, %v665, 0
        %672 = vmatprep.subr.bf16.mxu0 0
        %673 = vmatpush1.bf16.msra.mxu0 %v670
        %674 = vmatprep.subr.bf16.mxu0 0
        %675 = vmatpush1.bf16.msra.mxu0 0
        %676 = vmatprep.subr.bf16.mxu0 0
        %677 = vmatpush1.bf16.msra.mxu0 0
        %678 = vmatprep.subr.bf16.mxu0 0
        %679 = vmatpush1.bf16.msra.mxu0 0
        %680 = vmatprep.subr.bf16.mxu0 0
        %681 = vmatpush1.bf16.msra.mxu0 0
        %682 = vmatprep.subr.bf16.mxu0 0
        %683 = vmatpush1.bf16.msra.mxu0 0
        %684 = vmatprep.subr.bf16.mxu0 0
        %685 = vmatpush1.bf16.msra.mxu0 0
        %686 = vmatprep.subr.bf16.mxu0 0
        %687 = vmatpush1.bf16.msra.mxu0 0
        %688 = vmatprep.subr.bf16.mxu0 0
        %689 = vmatpush1.bf16.msra.mxu0 0
        %690 = vmatprep.subr.bf16.mxu0 0
        %691 = vmatpush1.bf16.msra.mxu0 0
        %692 = vmatprep.subr.bf16.mxu0 0
        %693 = vmatpush1.bf16.msra.mxu0 0
        %694 = vmatprep.subr.bf16.mxu0 0
        %695 = vmatpush1.bf16.msra.mxu0 0
        %696 = vmatprep.subr.bf16.mxu0 0
        %697 = vmatpush1.bf16.msra.mxu0 0
        %698 = vmatprep.subr.bf16.mxu0 0
        %699 = vmatpush1.bf16.msra.mxu0 0
        %700 = vmatprep.subr.bf16.mxu0 0
        %701 = vmatpush1.bf16.msra.mxu0 0
        %702 = vmatprep.subr.bf16.mxu0 0
        %703 = vmatpush1.bf16.msra.mxu0 0
        %704 = vmatprep.mubr.bf16.mxu0 0
        %705 = vmatmul.mubr.bf16.gmra.mrb[0].mxu0 %v667
        %v706 = vpop.f32.mrb[0].mxu0
        %v707 = vadd.f32 0.0, %v706
        %v708 = vpop.f32.mrb[0].mxu0
        %v709 = vpop.f32.mrb[0].mxu0
        %v710 = vpop.f32.mrb[0].mxu0
        %711 = vdwg.mxu0
        %v712 = vsel %vm495, %v662, 0.0
        %713 = vadd.xlane.f32.xlu0 %v712
        %v714 = vpop.xlane.xlu0 %713
        %v715 = vrcp.pop %v714
        %v716 = vmul.f32 %v707, %v715
        %718 = vrot.lane.b32.xlu0 %v716, 8
        %v719 = vpop.permute.xlu0 %718
        %vm721 = vcmask 130112
        %722 = vst.msk [vmem:[#allocation2] sm:$0xff] %vm721, %v719
        %723 = vrot.lane.b32.xlu0 %v490, 112
        %v724 = vpop.permute.xlu0 %723
        %725 = vrot.lane.b32.xlu0 %v491, 80
        %v726 = vpop.permute.xlu0 %725
        %v728 = vsel %vm495, %v724, 0
        %v731 = vsel %vm495, %v726, 0
        %733 = vmatprep.subr.bf16.mxu0 0
        %734 = vmatpush1.bf16.xpose.msra.mxu0 %v731
        %735 = vmatprep.subr.bf16.mxu0 0
        %736 = vmatpush1.bf16.xpose.msra.mxu0 0
        %737 = vmatprep.subr.bf16.mxu0 0
        %738 = vmatpush1.bf16.xpose.msra.mxu0 0
        %739 = vmatprep.subr.bf16.mxu0 0
        %740 = vmatpush1.bf16.xpose.msra.mxu0 0
        %741 = vmatprep.subr.bf16.mxu0 0
        %742 = vmatpush1.bf16.xpose.msra.mxu0 0
        %743 = vmatprep.subr.bf16.mxu0 0
        %744 = vmatpush1.bf16.xpose.msra.mxu0 0
        %745 = vmatprep.subr.bf16.mxu0 0
        %746 = vmatpush1.bf16.xpose.msra.mxu0 0
        %747 = vmatprep.subr.bf16.mxu0 0
        %748 = vmatpush1.bf16.xpose.msra.mxu0 0
        %749 = vmatprep.subr.bf16.mxu0 0
        %750 = vmatpush1.bf16.xpose.msra.mxu0 0
        %751 = vmatprep.subr.bf16.mxu0 0
        %752 = vmatpush1.bf16.xpose.msra.mxu0 0
        %753 = vmatprep.subr.bf16.mxu0 0
        %754 = vmatpush1.bf16.xpose.msra.mxu0 0
        %755 = vmatprep.subr.bf16.mxu0 0
        %756 = vmatpush1.bf16.xpose.msra.mxu0 0
        %757 = vmatprep.subr.bf16.mxu0 0
        %758 = vmatpush1.bf16.xpose.msra.mxu0 0
        %759 = vmatprep.subr.bf16.mxu0 0
        %760 = vmatpush1.bf16.xpose.msra.mxu0 0
        %761 = vmatprep.subr.bf16.mxu0 0
        %762 = vmatpush1.bf16.xpose.msra.mxu0 0
        %763 = vmatprep.subr.bf16.mxu0 0
        %764 = vmatpush1.bf16.xpose.msra.mxu0 0
        %765 = vmatprep.mubr.bf16.mxu0 0
        %766 = vmatmul.mubr.bf16.gmra.mrb[0].mxu0 %v728
        %v767 = vpop.f32.mrb[0].mxu0
        %v768 = vadd.f32 0.0, %v767
        %v769 = vpop.f32.mrb[0].mxu0
        %v770 = vpop.f32.mrb[0].mxu0
        %v771 = vpop.f32.mrb[0].mxu0
        %772 = vdwg.mxu0
        %v773 = vmul.f32 %v768, 0.35355338
        %v774 = vsel %vm495, %v773, -inf
        %775 = vmax.xlane.f32.xlu0 %v774
        %v776 = vpop.xlane.xlu0 %775
        %v777 = vsub.f32 %v773, %v776
        %v778 = vmul.f32 %v777, 1.442695
        %v779 = vpow.pop %v778
        %v780 = vpack.c.bf16 %v779, %v779
        %781 = vrot.lane.b32.xlu0 %v491, 48
        %v782 = vpop.permute.xlu0 %781
        %v784 = vsel %vm495, %v780, 0
        %v787 = vsel %vm555, %v782, 0
        %789 = vmatprep.subr.bf16.mxu0 0
        %790 = vmatpush1.bf16.msra.mxu0 %v787
        %791 = vmatprep.subr.bf16.mxu0 0
        %792 = vmatpush1.bf16.msra.mxu0 0
        %793 = vmatprep.subr.bf16.mxu0 0
        %794 = vmatpush1.bf16.msra.mxu0 0
        %795 = vmatprep.subr.bf16.mxu0 0
        %796 = vmatpush1.bf16.msra.mxu0 0
        %797 = vmatprep.subr.bf16.mxu0 0
        %798 = vmatpush1.bf16.msra.mxu0 0
        %799 = vmatprep.subr.bf16.mxu0 0
        %800 = vmatpush1.bf16.msra.mxu0 0
        %801 = vmatprep.subr.bf16.mxu0 0
        %802 = vmatpush1.bf16.msra.mxu0 0
        %803 = vmatprep.subr.bf16.mxu0 0
        %804 = vmatpush1.bf16.msra.mxu0 0
        %805 = vmatprep.subr.bf16.mxu0 0
        %806 = vmatpush1.bf16.msra.mxu0 0
        %807 = vmatprep.subr.bf16.mxu0 0
        %808 = vmatpush1.bf16.msra.mxu0 0
        %809 = vmatprep.subr.bf16.mxu0 0
        %810 = vmatpush1.bf16.msra.mxu0 0
        %811 = vmatprep.subr.bf16.mxu0 0
        %812 = vmatpush1.bf16.msra.mxu0 0
        %813 = vmatprep.subr.bf16.mxu0 0
        %814 = vmatpush1.bf16.msra.mxu0 0
        %815 = vmatprep.subr.bf16.mxu0 0
        %816 = vmatpush1.bf16.msra.mxu0 0
        %817 = vmatprep.subr.bf16.mxu0 0
        %818 = vmatpush1.bf16.msra.mxu0 0
        %819 = vmatprep.subr.bf16.mxu0 0
        %820 = vmatpush1.bf16.msra.mxu0 0
        %821 = vmatprep.mubr.bf16.mxu0 0
        %822 = vmatmul.mubr.bf16.gmra.mrb[0].mxu0 %v784
        %v823 = vpop.f32.mrb[0].mxu0
        %v824 = vadd.f32 0.0, %v823
        %v825 = vpop.f32.mrb[0].mxu0
        %v826 = vpop.f32.mrb[0].mxu0
        %v827 = vpop.f32.mrb[0].mxu0
        %828 = vdwg.mxu0
        %v829 = vsel %vm495, %v779, 0.0
        %830 = vadd.xlane.f32.xlu0 %v829
        %v831 = vpop.xlane.xlu0 %830
        %v832 = vrcp.pop %v831
        %v833 = vmul.f32 %v824, %v832
        %835 = vrot.lane.b32.xlu0 %v833, 16
        %v836 = vpop.permute.xlu0 %835
        %vm838 = vcmask 195712
        %839 = vst.msk [vmem:[#allocation2] sm:$0xff] %vm838, %v836
        %840 = vrot.lane.b32.xlu0 %v490, 104
        %v841 = vpop.permute.xlu0 %840
        %842 = vrot.lane.b32.xlu0 %v491, 72
        %v843 = vpop.permute.xlu0 %842
        %v845 = vsel %vm495, %v841, 0
        %v848 = vsel %vm495, %v843, 0
        %850 = vmatprep.subr.bf16.mxu0 0
        %851 = vmatpush1.bf16.xpose.msra.mxu0 %v848
        %852 = vmatprep.subr.bf16.mxu0 0
        %853 = vmatpush1.bf16.xpose.msra.mxu0 0
        %854 = vmatprep.subr.bf16.mxu0 0
        %855 = vmatpush1.bf16.xpose.msra.mxu0 0
        %856 = vmatprep.subr.bf16.mxu0 0
        %857 = vmatpush1.bf16.xpose.msra.mxu0 0
        %858 = vmatprep.subr.bf16.mxu0 0
        %859 = vmatpush1.bf16.xpose.msra.mxu0 0
        %860 = vmatprep.subr.bf16.mxu0 0
        %861 = vmatpush1.bf16.xpose.msra.mxu0 0
        %862 = vmatprep.subr.bf16.mxu0 0
        %863 = vmatpush1.bf16.xpose.msra.mxu0 0
        %864 = vmatprep.subr.bf16.mxu0 0
        %865 = vmatpush1.bf16.xpose.msra.mxu0 0
        %866 = vmatprep.subr.bf16.mxu0 0
        %867 = vmatpush1.bf16.xpose.msra.mxu0 0
        %868 = vmatprep.subr.bf16.mxu0 0
        %869 = vmatpush1.bf16.xpose.msra.mxu0 0
        %870 = vmatprep.subr.bf16.mxu0 0
        %871 = vmatpush1.bf16.xpose.msra.mxu0 0
        %872 = vmatprep.subr.bf16.mxu0 0
        %873 = vmatpush1.bf16.xpose.msra.mxu0 0
        %874 = vmatprep.subr.bf16.mxu0 0
        %875 = vmatpush1.bf16.xpose.msra.mxu0 0
        %876 = vmatprep.subr.bf16.mxu0 0
        %877 = vmatpush1.bf16.xpose.msra.mxu0 0
        %878 = vmatprep.subr.bf16.mxu0 0
        %879 = vmatpush1.bf16.xpose.msra.mxu0 0
        %880 = vmatprep.subr.bf16.mxu0 0
        %881 = vmatpush1.bf16.xpose.msra.mxu0 0
        %882 = vmatprep.mubr.bf16.mxu0 0
        %883 = vmatmul.mubr.bf16.gmra.mrb[0].mxu0 %v845
        %v884 = vpop.f32.mrb[0].mxu0
        %v885 = vadd.f32 0.0, %v884
        %v886 = vpop.f32.mrb[0].mxu0
        %v887 = vpop.f32.mrb[0].mxu0
        %v888 = vpop.f32.mrb[0].mxu0
        %889 = vdwg.mxu0
        %v890 = vmul.f32 %v885, 0.35355338
        %v891 = vsel %vm495, %v890, -inf
        %892 = vmax.xlane.f32.xlu0 %v891
        %v893 = vpop.xlane.xlu0 %892
        %v894 = vsub.f32 %v890, %v893
        %v895 = vmul.f32 %v894, 1.442695
        %v896 = vpow.pop %v895
        %v897 = vpack.c.bf16 %v896, %v896
        %898 = vrot.lane.b32.xlu0 %v491, 40
        %v899 = vpop.permute.xlu0 %898
        %v901 = vsel %vm495, %v897, 0
        %v904 = vsel %vm555, %v899, 0
        %906 = vmatprep.subr.bf16.mxu0 0
        %907 = vmatpush1.bf16.msra.mxu0 %v904
        %908 = vmatprep.subr.bf16.mxu0 0
        %909 = vmatpush1.bf16.msra.mxu0 0
        %910 = vmatprep.subr.bf16.mxu0 0
        %911 = vmatpush1.bf16.msra.mxu0 0
        %912 = vmatprep.subr.bf16.mxu0 0
        %913 = vmatpush1.bf16.msra.mxu0 0
        %914 = vmatprep.subr.bf16.mxu0 0
        %915 = vmatpush1.bf16.msra.mxu0 0
        %916 = vmatprep.subr.bf16.mxu0 0
        %917 = vmatpush1.bf16.msra.mxu0 0
        %918 = vmatprep.subr.bf16.mxu0 0
        %919 = vmatpush1.bf16.msra.mxu0 0
        %920 = vmatprep.subr.bf16.mxu0 0
        %921 = vmatpush1.bf16.msra.mxu0 0
        %922 = vmatprep.subr.bf16.mxu0 0
        %923 = vmatpush1.bf16.msra.mxu0 0
        %924 = vmatprep.subr.bf16.mxu0 0
        %925 = vmatpush1.bf16.msra.mxu0 0
        %926 = vmatprep.subr.bf16.mxu0 0
        %927 = vmatpush1.bf16.msra.mxu0 0
        %928 = vmatprep.subr.bf16.mxu0 0
        %929 = vmatpush1.bf16.msra.mxu0 0
        %930 = vmatprep.subr.bf16.mxu0 0
        %931 = vmatpush1.bf16.msra.mxu0 0
        %932 = vmatprep.subr.bf16.mxu0 0
        %933 = vmatpush1.bf16.msra.mxu0 0
        %934 = vmatprep.subr.bf16.mxu0 0
        %935 = vmatpush1.bf16.msra.mxu0 0
        %936 = vmatprep.subr.bf16.mxu0 0
        %937 = vmatpush1.bf16.msra.mxu0 0
        %938 = vmatprep.mubr.bf16.mxu0 0
        %939 = vmatmul.mubr.bf16.gmra.mrb[0].mxu0 %v901
        %v940 = vpop.f32.mrb[0].mxu0
        %v941 = vadd.f32 0.0, %v940
        %v942 = vpop.f32.mrb[0].mxu0
        %v943 = vpop.f32.mrb[0].mxu0
        %v944 = vpop.f32.mrb[0].mxu0
        %945 = vdwg.mxu0
        %v946 = vsel %vm495, %v896, 0.0
        %947 = vadd.xlane.f32.xlu0 %v946
        %v948 = vpop.xlane.xlu0 %947
        %v949 = vrcp.pop %v948
        %v950 = vmul.f32 %v941, %v949
        %952 = vrot.lane.b32.xlu0 %v950, 24
        %v953 = vpop.permute.xlu0 %952
        %vm955 = vcmask 261312
        %956 = vst.msk [vmem:[#allocation2] sm:$0xff] %vm955, %v953
        %v957 = vld [vmem:[#allocation2] sm:$0xff]
        %v958 = vsub.f32 %v489, %v957
        %v959 = vpack.c.bf16 %v958, %v958
        %v960 = vld [vmem:[%s3] sm:$0xf]
        %v961 = vld [vmem:[%s3 + $0x4] sm:$0xf]
        %v962 = vld [vmem:[%s3 + $0x8] sm:$0xf]
        %v963 = vld [vmem:[%s3 + $0xc] sm:$0xf]
        %v964 = vlaneseq
        %v965 = vshrl.u32 %v964, 7
        %v966 = vsub.s32 1, %v965
        %v967 = vrot.slane %v304, %v966
        %v972 = vunpack.c.l.b16 %v960
        %v973 = vunpack.c.l.b16 %v961
        %v974 = vunpack.c.l.b16 %v962
        %v975 = vunpack.c.l.b16 %v963
        %v976 = vpack.c.b16 %v973, %v972
        %v977 = vpack.c.b16 %v975, %v974
        %v981 = vsel %vm306, %v959, 0
        %983 = vmatprep.subr.bf16.mxu0 0
        %984 = vmatpush1.bf16.msra.mxu0 %v976
        %985 = vmatprep.subr.bf16.mxu0 0
        %986 = vmatpush1.bf16.msra.mxu0 %v977
        %987 = vmatprep.subr.bf16.mxu0 0
        %988 = vmatpush1.bf16.msra.mxu0 0
        %989 = vmatprep.subr.bf16.mxu0 0
        %990 = vmatpush1.bf16.msra.mxu0 0
        %991 = vmatprep.subr.bf16.mxu0 0
        %992 = vmatpush1.bf16.msra.mxu0 0
        %993 = vmatprep.subr.bf16.mxu0 0
        %994 = vmatpush1.bf16.msra.mxu0 0
        %995 = vmatprep.subr.bf16.mxu0 0
        %996 = vmatpush1.bf16.msra.mxu0 0
        %997 = vmatprep.subr.bf16.mxu0 0
        %998 = vmatpush1.bf16.msra.mxu0 0
        %999 = vmatprep.subr.bf16.mxu0 0
        %1000 = vmatpush1.bf16.msra.mxu0 0
        %1001 = vmatprep.subr.bf16.mxu0 0
        %1002 = vmatpush1.bf16.msra.mxu0 0
        %1003 = vmatprep.subr.bf16.mxu0 0
        %1004 = vmatpush1.bf16.msra.mxu0 0
        %1005 = vmatprep.subr.bf16.mxu0 0
        %1006 = vmatpush1.bf16.msra.mxu0 0
        %1007 = vmatprep.subr.bf16.mxu0 0
        %1008 = vmatpush1.bf16.msra.mxu0 0
        %1009 = vmatprep.subr.bf16.mxu0 0
        %1010 = vmatpush1.bf16.msra.mxu0 0
        %1011 = vmatprep.subr.bf16.mxu0 0
        %1012 = vmatpush1.bf16.msra.mxu0 0
        %1013 = vmatprep.subr.bf16.mxu0 0
        %1014 = vmatpush1.bf16.msra.mxu0 0
        %1015 = vmatprep.mubr.bf16.mxu0 0
        %1016 = vmatmul.mubr.bf16.gmra.mrb[0].mxu0 %v981
        %v1017 = vpop.f32.mrb[0].mxu0
        %v1018 = vadd.f32 %v967, %v1017
        %v1019 = vpop.f32.mrb[0].mxu0
        %v1020 = vpop.f32.mrb[0].mxu0
        %v1021 = vpop.f32.mrb[0].mxu0
        %1022 = vdwg.mxu0
        %v1023 = vadd.f32 %v303, %v1018
        %v1024 = vsel %vm306, %v1023, 0.0
        %1025 = vadd.xlane.f32.xlu0 %v1024
        %v1026 = vpop.xlane.xlu0 %1025
        %v1027 = vmul.f32 %v1026, %v310
        %v1028 = vsub.f32 %v1023, %v1027
        %v1029 = vmul.f32 %v1028, %v1028
        %v1030 = vsel %vm306, %v1029, 0.0
        %1031 = vadd.xlane.f32.xlu0 %v1030
        %v1032 = vpop.xlane.xlu0 %1031
        %v1033 = vmul.f32 %v1032, %v310
        %v1034 = vadd.f32 %v1033, 1e-05
        %v1035 = vrsqrt.pop %v1034
        %v1036 = vmul.f32 %v1028, %v1035
        %v1037 = vlaneseq
        %v1038 = vshrl.u32 %v1037, 7
        %v1039 = vsub.s32 4, %v1038
        %v1040 = vrot.slane %v304, %v1039
        %v1041 = vmul.f32 %v1036, %v1040
        %v1042 = vlaneseq
        %v1043 = vshrl.u32 %v1042, 7
        %v1044 = vsub.s32 5, %v1043
        %v1045 = vrot.slane %v304, %v1044
        %v1046 = vadd.f32 %v1041, %v1045
        %v1047 = vpack.c.bf16 %v1046, %v1046
        %v1048 = vld [vmem:[%s4] sm:$0xf]
        %v1049 = vld [vmem:[%s4 + $0x4] sm:$0xf]
        %v1050 = vld [vmem:[%s4 + $0x8] sm:$0xf]
        %v1051 = vld [vmem:[%s4 + $0xc] sm:$0xf]
        %v1053 = vlaneseq
        %v1054 = vshrl.u32 %v1053, 7
        %v1055 = vsub.s32 0, %v1054
        %v1056 = vrot.slane %v305, %v1055
        %v1062 = vunpack.c.l.b16 %v1048
        %v1063 = vunpack.c.l.b16 %v1049
        %v1064 = vunpack.c.l.b16 %v1050
        %v1065 = vunpack.c.l.b16 %v1051
        %v1066 = vpack.c.b16 %v1063, %v1062
        %v1067 = vpack.c.b16 %v1065, %v1064
        %v1071 = vsel %vm306, %v1047, 0
        %1073 = vmatprep.subr.bf16.mxu0 0
        %1074 = vmatpush1.bf16.msra.mxu0 %v1066
        %1075 = vmatprep.subr.bf16.mxu0 0
        %1076 = vmatpush1.bf16.msra.mxu0 %v1067
        %1077 = vmatprep.subr.bf16.mxu0 0
        %1078 = vmatpush1.bf16.msra.mxu0 0
        %1079 = vmatprep.subr.bf16.mxu0 0
        %1080 = vmatpush1.bf16.msra.mxu0 0
        %1081 = vmatprep.subr.bf16.mxu0 0
        %1082 = vmatpush1.bf16.msra.mxu0 0
        %1083 = vmatprep.subr.bf16.mxu0 0
        %1084 = vmatpush1.bf16.msra.mxu0 0
        %1085 = vmatprep.subr.bf16.mxu0 0
        %1086 = vmatpush1.bf16.msra.mxu0 0
        %1087 = vmatprep.subr.bf16.mxu0 0
        %1088 = vmatpush1.bf16.msra.mxu0 0
        %1089 = vmatprep.subr.bf16.mxu0 0
        %1090 = vmatpush1.bf16.msra.mxu0 0
        %1091 = vmatprep.subr.bf16.mxu0 0
        %1092 = vmatpush1.bf16.msra.mxu0 0
        %1093 = vmatprep.subr.bf16.mxu0 0
        %1094 = vmatpush1.bf16.msra.mxu0 0
        %1095 = vmatprep.subr.bf16.mxu0 0
        %1096 = vmatpush1.bf16.msra.mxu0 0
        %1097 = vmatprep.subr.bf16.mxu0 0
        %1098 = vmatpush1.bf16.msra.mxu0 0
        %1099 = vmatprep.subr.bf16.mxu0 0
        %1100 = vmatpush1.bf16.msra.mxu0 0
        %1101 = vmatprep.subr.bf16.mxu0 0
        %1102 = vmatpush1.bf16.msra.mxu0 0
        %1103 = vmatprep.subr.bf16.mxu0 0
        %1104 = vmatpush1.bf16.msra.mxu0 0
        %1105 = vmatprep.mubr.bf16.mxu0 0
        %1106 = vmatmul.mubr.bf16.gmra.mrb[0].mxu0 %v1071
        %v1107 = vpop.f32.mrb[0].mxu0
        %v1108 = vadd.f32 %v1056, %v1107
        %v1109 = vpop.f32.mrb[0].mxu0
        %v1110 = vpop.f32.mrb[0].mxu0
        %v1111 = vpop.f32.mrb[0].mxu0
        %1112 = vdwg.mxu0
        %v1113 = vmul.f32 %v1108, 0.5
        %v1114 = vmul.f32 %v1108, 0.70710677
        %v1115 = verf.f32.pop %v1114
        %v1116 = vadd.f32 %v1115, 1.0
        %v1117 = vmul.f32 %v1113, %v1116
        %v1118 = vpack.c.bf16 %v1117, %v1117
        %v1119 = vld [vmem:[%s5] sm:$0xf]
        %v1120 = vld [vmem:[%s5 + $0x4] sm:$0xf]
        %v1121 = vld [vmem:[%s5 + $0x8] sm:$0xf]
        %v1122 = vld [vmem:[%s5 + $0xc] sm:$0xf]
        %v1123 = vld [vmem:[%s5 + $0x10] sm:$0xf]
        %v1124 = vld [vmem:[%s5 + $0x14] sm:$0xf]
        %v1125 = vld [vmem:[%s5 + $0x18] sm:$0xf]
        %v1126 = vld [vmem:[%s5 + $0x1c] sm:$0xf]
        %v1127 = vlaneseq
        %v1128 = vshrl.u32 %v1127, 7
        %v1129 = vsub.s32 6, %v1128
        %v1130 = vrot.slane %v304, %v1129
        %v1139 = vunpack.c.l.b16 %v1119
        %v1140 = vunpack.c.l.b16 %v1120
        %v1141 = vunpack.c.l.b16 %v1121
        %v1142 = vunpack.c.l.b16 %v1122
        %v1143 = vunpack.c.l.b16 %v1123
        %v1144 = vunpack.c.l.b16 %v1124
        %v1145 = vunpack.c.l.b16 %v1125
        %v1146 = vunpack.c.l.b16 %v1126
        %v1147 = vpack.c.b16 %v1140, %v1139
        %v1148 = vpack.c.b16 %v1142, %v1141
        %v1149 = vpack.c.b16 %v1144, %v1143
        %v1150 = vpack.c.b16 %v1146, %v1145
        %v1156 = vsel %vm441, %v1118, 0
        %1158 = vmatprep.subr.bf16.mxu0 0
        %1159 = vmatpush1.bf16.msra.mxu0 %v1147
        %1160 = vmatprep.subr.bf16.mxu0 0
        %1161 = vmatpush1.bf16.msra.mxu0 %v1148
        %1162 = vmatprep.subr.bf16.mxu0 0
        %1163 = vmatpush1.bf16.msra.mxu0 %v1149
        %1164 = vmatprep.subr.bf16.mxu0 0
        %1165 = vmatpush1.bf16.msra.mxu0 %v1150
        %1166 = vmatprep.subr.bf16.mxu0 0
        %1167 = vmatpush1.bf16.msra.mxu0 0
        %1168 = vmatprep.subr.bf16.mxu0 0
        %1169 = vmatpush1.bf16.msra.mxu0 0
        %1170 = vmatprep.subr.bf16.mxu0 0
        %1171 = vmatpush1.bf16.msra.mxu0 0
        %1172 = vmatprep.subr.bf16.mxu0 0
        %1173 = vmatpush1.bf16.msra.mxu0 0
        %1174 = vmatprep.subr.bf16.mxu0 0
        %1175 = vmatpush1.bf16.msra.mxu0 0
        %1176 = vmatprep.subr.bf16.mxu0 0
        %1177 = vmatpush1.bf16.msra.mxu0 0
        %1178 = vmatprep.subr.bf16.mxu0 0
        %1179 = vmatpush1.bf16.msra.mxu0 0
        %1180 = vmatprep.subr.bf16.mxu0 0
        %1181 = vmatpush1.bf16.msra.mxu0 0
        %1182 = vmatprep.subr.bf16.mxu0 0
        %1183 = vmatpush1.bf16.msra.mxu0 0
        %1184 = vmatprep.subr.bf16.mxu0 0
        %1185 = vmatpush1.bf16.msra.mxu0 0
        %1186 = vmatprep.subr.bf16.mxu0 0
        %1187 = vmatpush1.bf16.msra.mxu0 0
        %1188 = vmatprep.subr.bf16.mxu0 0
        %1189 = vmatpush1.bf16.msra.mxu0 0
        %1190 = vmatprep.mubr.bf16.mxu0 0
        %1191 = vmatmul.mubr.bf16.gmra.mrb[0].mxu0 %v1156
        %v1192 = vpop.f32.mrb[0].mxu0
        %v1193 = vadd.f32 %v1130, %v1192
        %v1194 = vpop.f32.mrb[0].mxu0
        %v1195 = vpop.f32.mrb[0].mxu0
        %v1196 = vpop.f32.mrb[0].mxu0
        %1197 = vdwg.mxu0
        %v1198 = vadd.f32 %v1023, %v1193
        %1199 = vst.msk [vmem:[%s296] sm:$0xff] %vm306, %v1198
        %s1200 = sand.u32 %s203, 1
        %s1201 = scalar_lea.sflag [#allocation4], %s1200
        %s1202 = sand.u32 %s203, 1
        %s1203 = smul.addr %s1202, 8
        %s1204 = scalar_lea.vmem [#allocation3], %s1203
        // Predicated region
        $region53: #{tpu_custom_call.1} parent=51 // pred_check
          %p1205 = pneg %p213
        $region54: #{tpu_custom_call.1} parent=51 // pred_check_branch
          %1207 = sbr.rel (%p1205) target = $region56
        $region55: #{tpu_custom_call.1} parent=51 // pred_region
          %s1209 = ssub.s32 128, 128
          %1210 = vsyncadd %s1201, %s1209
          %s1211 = smul.addr %s22, 128
          %s1212 = scalar_lea.hbm %s8, %s1211
          %s1214 = sshll.u32 %s1204, 4
          %s1215 = int_to_ptr.vmem [resolvable:$true] %s1214
          %1217 = dma.vmem_to_hbm [thread:$0]  %s1215, 128, %s1212, %s1201
        $region56: #{tpu_custom_call.1} parent=51 // pred_fallthru
          _
      $region52: #{tpu_custom_call.1} parent=5 // pred_fallthru
        _
      %p1218 = scmp.le.s32.totalorder 2, %s17
      // Predicated region
      $region57: #{tpu_custom_call.1} parent=5 // pred_check
        %p1219 = pneg %p1218
      $region58: #{tpu_custom_call.1} parent=5 // pred_check_branch
        %1221 = sbr.rel (%p1219) target = $region60
      $region59: #{tpu_custom_call.1} parent=5 // pred_region
        %s1222 = ssub.s32 %s17, 2
        // Predicated region
        $region61: #{tpu_custom_call.1} parent=59 // pred_check
          %p1223 = pneg %p219
        $region62: #{tpu_custom_call.1} parent=59 // pred_check_branch
          %1225 = sbr.rel (%p1223) target = $region64
        $region63: #{tpu_custom_call.1} parent=59 // pred_region
          %s1226 = sand.u32 %s204, 1
          %s1227 = scalar_lea.sflag [#allocation4], %s1226
          %s1228 = sand.u32 %s204, 1
          %s1229 = smul.addr %s1228, 8
          %s1230 = scalar_lea.vmem [#allocation3], %s1229
          %1231 = dma.done %s1227, 128
        $region64: #{tpu_custom_call.1} parent=59 // pred_fallthru
          _
      $region60: #{tpu_custom_call.1} parent=5 // pred_fallthru
        _
    $region6: #{tpu_custom_call.1} parent=1 // loop_footer
      %s21 = sadd.s32 1, %s17
    $region7: #{tpu_custom_call.1} parent=1 // loop_footer_branch
      %16 = sbr.rel target = $region3
    $region8: #{tpu_custom_call.1} parent=1 // loop_exit
      _
    %1232 = vsyncpa [#allocation4], 1
    %s1233 = scalar_lea.sflag [#allocation4], 1
    %1234 = vsyncpa %s1233, 1

</llo_original>
